<compile_context>
chip_gen: v6e
topology: v6e:2x2x1
jax: 0.10.0
libtpu: 0.0.40
codegen_flags: <defaults>
</compile_context>

<pallas_src>
import math
import numpy as np
import jax
import jax.numpy as jnp
from jax import lax
from jax.experimental import pallas as pl
from jax.experimental.pallas import tpu as pltpu

WS = 11          # SSIM gaussian window (real size = min(11, H, W))
SIGMA = 1.5
C1 = 0.01 ** 2   # SSIM constants, data range L = 1 (inputs in [0, 1])
C2 = 0.03 ** 2
LANES = 128


def _gauss1d(ws, sigma):
    g = np.array([math.exp(-((x - ws // 2) ** 2) / (2.0 * sigma ** 2)) for x in range(ws)],
                 dtype=np.float64)
    return (g / g.sum()).astype(np.float32)


def _round_up(x, m):
    return (x + m - 1) // m * m


def _build_gauss_mats(B, H, W, ws, g):
    """Banded matrices so the separable 'valid' gaussian becomes two f32 MXU matmuls."""
    Ho, Wo = H - ws + 1, W - ws + 1
    WOP = _round_up(max(Wo, 1), LANES)                 # lane-dense output width
    Gw = np.zeros((W, WOP), np.float32)                # column (lane) pass, right-multiply
    for j in range(Wo):
        Gw[j:j + ws, j] = g
    Gh = np.zeros((Ho, H), np.float32)                 # row (sublane) pass, left-multiply
    for a in range(Ho):
        Gh[a, a:a + ws] = g
    GhB = np.kron(np.eye(B, dtype=np.float32), Gh)     # block-diagonal over the batch
    return Gw, GhB, Ho, Wo, WOP


def _make_kernel(N, B, H, W):
    BH = B * H

    def sobel_abs(pad_ref):
        """|sobel_x| + |sobel_y| with zero padding supplied by the scratch border."""
        xp = pad_ref[...]                                    # (B, H+2, W+2)

        def sh(a, b):
            return xp[:, a:a + H, b:b + W]

        dx1 = sh(1, 2) - sh(1, 0)
        sx = (sh(0, 2) - sh(0, 0)) + (dx1 + dx1) + (sh(2, 2) - sh(2, 0))
        dy1 = sh(0, 1) - sh(2, 1)
        sy = (sh(0, 0) - sh(2, 0)) + (dy1 + dy1) + (sh(0, 2) - sh(2, 2))
        return jnp.abs(sx) + jnp.abs(sy)

    def kernel(gt_ref, fused_ref, gw_ref, ghb_ref, out_ref,
               joint_ref, pad_ref, mu2_ref, sig2_ref):
        f32 = jnp.float32
        i = pl.program_id(0)
        last = pl.num_programs(0) - 1

        gt = gt_ref[0]                                       # (B, H, W)
        fused = fused_ref[...]                               # (B, H, W)
        gw = gw_ref[...]                                     # (W, WOP)
        ghb = ghb_ref[...]                                   # (B*Ho, B*H)
        lane = lax.broadcasted_iota(jnp.int32, (1, LANES), 1)

        def gfilt(x):                                        # (B, H, W) -> (B*Ho, WOP) on the MXU
            h = jnp.dot(x.reshape(BH, W), gw, preferred_element_type=jnp.float32)
            return jnp.dot(ghb, h, preferred_element_type=jnp.float32)

        @pl.when(i == 0)
        def _init():
            out_ref[...] = jnp.zeros_like(out_ref)
            joint_ref[...] = gt
            pad_ref[...] = jnp.zeros_like(pad_ref)           # border stays zero afterwards
            mu2 = gfilt(fused)                               # cache fused stats once
            mu2_ref[...] = mu2
            sig2_ref[...] = gfilt(fused * fused) - mu2 * mu2

        @pl.when(i > 0)
        def _accum_joint():
            joint_ref[...] = jnp.maximum(joint_ref[...], gt)

        # --- Sobel |gx|+|gy| of GT_i (VPU) ---------------------------------------------------
        pad_ref[:, 1:H + 1, 1:W + 1] = gt
        grad_sum = jnp.sum(sobel_abs(pad_ref))

        # --- SSIM(GT_i, fused): separable gaussian via MXU matmuls ---------------------------
        mu1 = gfilt(gt)
        mu2 = mu2_ref[...]
        sig1 = gfilt(gt * gt) - mu1 * mu1
        sig12 = gfilt(gt * fused) - mu1 * mu2
        sig2 = sig2_ref[...]
        num = (2.0 * mu1 * mu2 + C1) * (2.0 * sig12 + C2)
        den = (mu1 * mu1 + mu2 * mu2 + C1) * (sig1 + sig2 + C2)
        ssim_sum = jnp.sum(num / den)       # lane-padded cols contribute exactly 1.0 each

        out_ref[...] += ((lane == 2 + i).astype(f32) * grad_sum
                         + (lane == 2 + N + i).astype(f32) * ssim_sum)

        @pl.when(i == last)
        def _finalize():
            joint = joint_ref[...]
            l1_sum = jnp.sum(jnp.abs(fused - joint))
            pad_ref[:, 1:H + 1, 1:W + 1] = fused
            gradf_sum = jnp.sum(jnp.abs(sobel_abs(pad_ref) - joint))
            out_ref[...] += ((lane == 0).astype(f32) * l1_sum
                             + (lane == 1).astype(f32) * gradf_sum)

    return kernel


def _fusion_core(gts, fused):
    """gts: (N, B, H, W) f32 stacked source images; fused: (B, H, W) f32."""
    N, B, H, W = gts.shape
    ws = min(WS, H, W)
    g = _gauss1d(ws, SIGMA)
    Gw, GhB, Ho, Wo, WOP = _build_gauss_mats(B, H, W, ws, g)

    n_img = B * H * W
    gfilt_flops = 2 * (B * H) * W * WOP + 2 * (B * Ho) * (B * H) * WOP
    cost = pl.CostEstimate(
        flops=int(N * (4 * gfilt_flops + 30 * n_img) + 2 * gfilt_flops),
        transcendentals=0,
        bytes_accessed=int((N + 1) * n_img * 4 + (Gw.size + GhB.size + LANES) * 4),
    )

    out = pl.pallas_call(
        _make_kernel(N, B, H, W),
        out_shape=jax.ShapeDtypeStruct((1, LANES), jnp.float32),
        grid_spec=pltpu.PrefetchScalarGridSpec(
            num_scalar_prefetch=0,
            grid=(N,),
            in_specs=[
                pl.BlockSpec((1, B, H, W), lambda i: (i, 0, 0, 0)),   # one GT per step
                pl.BlockSpec((B, H, W), lambda i: (0, 0, 0)),          # fused, resident
                pl.BlockSpec((W, WOP), lambda i: (0, 0)),              # Gw, resident
                pl.BlockSpec((B * Ho, B * H), lambda i: (0, 0)),       # GhB, resident
            ],
            out_specs=pl.BlockSpec((1, LANES), lambda i: (0, 0)),      # lane-dense accumulator
            scratch_shapes=[
                pltpu.VMEM((B, H, W), jnp.float32),                    # running max of raw GTs
                pltpu.VMEM((B, H + 2, W + 2), jnp.float32),            # zero-border Sobel pad
                pltpu.VMEM((B * Ho, WOP), jnp.float32),                # gaussian(fused)
                pltpu.VMEM((B * Ho, WOP), jnp.float32),                # sigma^2 of fused
            ],
        ),
        compiler_params=pltpu.CompilerParams(dimension_semantics=("arbitrary",)),
        cost_estimate=cost,
    )(gts, fused, jnp.asarray(Gw), jnp.asarray(GhB))

    row = out[0]
    l1_sum = row[0]
    grad_sum = row[1]
    g_sums = row[2:2 + N]
    pad_ones = float((WOP - Wo) * (B * Ho))            # padded SSIM-map columns are exactly 1.0
    ssim_sums = row[2 + N:2 + 2 * N] - pad_ones

    gmeans = g_sums / n_img
    ssim_vals = ssim_sums / (B * Ho * Wo)
    weights = gmeans / (gmeans[0] + gmeans[1])
    if N > 2:                                          # general form (vanishes for the 2-image spec)
        weights = weights + jnp.sum(gmeans[2:])
    loss_ssim_inner = jnp.sum(weights * ssim_vals)

    loss_l1 = 20.0 * l1_sum / n_img
    loss_gradient = 20.0 * grad_sum / n_img
    loss_SSIM = 10.0 * (1.0 - loss_ssim_inner)
    fusion_loss = loss_l1 + loss_gradient + loss_SSIM
    return fusion_loss, loss_gradient, loss_l1, loss_SSIM


def fusion_loss_vif(image_A, image_B, image_fused):
    """Matches fusion_loss_vif.forward (NCHW inputs with C == 1)."""
    gts = jnp.stack([image_A.astype(jnp.float32)[:, 0],
                     image_B.astype(jnp.float32)[:, 0]])          # (2, B, H, W)
    fused = image_fused.astype(jnp.float32)[:, 0]                 # (B, H, W)
    return _fusion_core(gts, fused)


# ----------------------------- pure-JAX reference (for checking) -----------------------------
def _reference(image_A, image_B, image_fused):
    prec = lax.Precision.HIGHEST
    kx = jnp.array([[-1., 0., 1.], [-2., 0., 2.], [-1., 0., 1.]], jnp.float32)[None, None]
    ky = jnp.array([[1., 2., 1.], [0., 0., 0.], [-1., -2., -1.]], jnp.float32)[None, None]

    def sobel(x):
        cx = lax.conv_general_dilated(x, kx, (1, 1), ((1, 1), (1, 1)), precision=prec)
        cy = lax.conv_general_dilated(x, ky, (1, 1), ((1, 1), (1, 1)), precision=prec)
        return jnp.abs(cx) + jnp.abs(cy)

    _, _, H, W = image_fused.shape
    ws = min(WS, H, W)
    g = jnp.asarray(_gauss1d(ws, SIGMA))
    win = (g[:, None] * g[None, :])[None, None]

    def gconv(x):
        return lax.conv_general_dilated(x, win, (1, 1), 'VALID', precision=prec)

    def ssim(a, b):
        mu1, mu2 = gconv(a), gconv(b)
        s1 = gconv(a * a) - mu1 ** 2
        s2 = gconv(b * b) - mu2 ** 2
        s12 = gconv(a * b) - mu1 * mu2
        m = ((2 * mu1 * mu2 + C1) * (2 * s12 + C2)) / ((mu1 ** 2 + mu2 ** 2 + C1) * (s1 + s2 + C2))
        return jnp.mean(m)

    A = image_A.astype(jnp.float32)
    Bm = image_B.astype(jnp.float32)
    Fu = image_fused.astype(jnp.float32)
    joint = jnp.maximum(A, Bm)
    loss_l1 = 20.0 * jnp.mean(jnp.abs(Fu - joint))
    loss_grad = 20.0 * jnp.mean(jnp.abs(sobel(Fu) - joint))
    gA, gB = jnp.mean(sobel(A)), jnp.mean(sobel(Bm))
    wA = gA / (gA + gB)
    wB = gB / (gA + gB)
    loss_SSIM = 10.0 * (1.0 - (wA * ssim(A, Fu) + wB * ssim(Bm, Fu)))
    return loss_l1 + loss_grad + loss_SSIM, loss_grad, loss_l1, loss_SSIM


if __name__ == "__main__":
    key = jax.random.PRNGKey(0)
    B, C, H, W = 2, 1, 16, 16
    kA, kB, kF = jax.random.split(key, 3)
    image_A = jax.random.uniform(kA, (B, C, H, W), dtype=jnp.float32)
    image_B = jax.random.uniform(kB, (B, C, H, W), dtype=jnp.float32)
    image_fused = jax.random.uniform(kF, (B, C, H, W), dtype=jnp.float32)

    out = fusion_loss_vif(image_A, image_B, image_fused)
    out = jax.block_until_ready(out)

    ref = _reference(image_A, image_B, image_fused)
    for a, b in zip(out, ref):
        np.testing.assert_allclose(np.asarray(a), np.asarray(b), rtol=1e-3, atol=1e-4)

    print("KERNEL_OK")
</pallas_src>

<mosaic_0001>
module attributes {stable_mosaic.version = 11 : i64} {
  func.func @kernel(%arg0: i32, %arg1: memref<1x2x16x16xf32, #tpu.memory_space<vmem>>, %arg2: memref<2x16x16xf32, #tpu.memory_space<vmem>>, %arg3: memref<16x128xf32, #tpu.memory_space<vmem>>, %arg4: memref<12x32xf32, #tpu.memory_space<vmem>>, %arg5: memref<1x128xf32, #tpu.memory_space<vmem>>, %arg6: memref<2x16x16xf32, #tpu.memory_space<vmem>>, %arg7: memref<2x18x18xf32, #tpu.memory_space<vmem>>, %arg8: memref<12x128xf32, #tpu.memory_space<vmem>>, %arg9: memref<12x128xf32, #tpu.memory_space<vmem>>) attributes {dimension_semantics = [#tpu.dimension_semantics<arbitrary>], iteration_bounds = array<i64: 2>, scalar_prefetch = 0 : i64, scratch_operands = 4 : i64, tpu.core_type = #tpu.core_type<tc>, window_params = [{transform_indices = @transform_0, window_bounds = array<i64: 1, 2, 16, 16>}, {pipeline_mode = #tpu.pipeline_mode<synchronous>, transform_indices = @transform_1, window_bounds = array<i64: 2, 16, 16>}, {pipeline_mode = #tpu.pipeline_mode<synchronous>, transform_indices = @transform_2, window_bounds = array<i64: 16, 128>}, {pipeline_mode = #tpu.pipeline_mode<synchronous>, transform_indices = @transform_3, window_bounds = array<i64: 12, 32>}, {pipeline_mode = #tpu.pipeline_mode<synchronous>, transform_indices = @transform_4, window_bounds = array<i64: 1, 128>}]} {
    %c0 = arith.constant 0 : index
    %c0_0 = arith.constant 0 : index
    %c0_1 = arith.constant 0 : index
    %c0_2 = arith.constant 0 : index
    %0 = vector.load %arg1[%c0, %c0_0, %c0_1, %c0_2] : memref<1x2x16x16xf32, #tpu.memory_space<vmem>>, vector<1x2x16x16xf32>
    %1 = vector.shape_cast %0 : vector<1x2x16x16xf32> to vector<2x16x16xf32>
    %c0_3 = arith.constant 0 : index
    %c0_4 = arith.constant 0 : index
    %c0_5 = arith.constant 0 : index
    %2 = vector.load %arg2[%c0_3, %c0_4, %c0_5] : memref<2x16x16xf32, #tpu.memory_space<vmem>>, vector<2x16x16xf32>
    %c0_6 = arith.constant 0 : index
    %c0_7 = arith.constant 0 : index
    %3 = vector.load %arg3[%c0_6, %c0_7] : memref<16x128xf32, #tpu.memory_space<vmem>>, vector<16x128xf32>
    %c0_8 = arith.constant 0 : index
    %c0_9 = arith.constant 0 : index
    %4 = vector.load %arg4[%c0_8, %c0_9] : memref<12x32xf32, #tpu.memory_space<vmem>>, vector<12x32xf32>
    %5 = tpu.iota {dimensions = array<i32: 1>} : vector<1x128xi32>
    %c0_i32 = arith.constant 0 : i32
    %6 = arith.cmpi eq, %arg0, %c0_i32 : i32
    %7 = arith.extui %6 : i1 to i32
    %c0_i32_10 = arith.constant 0 : i32
    %8 = arith.cmpi ne, %7, %c0_i32_10 : i32
    scf.if %8 {
      %cst_40 = arith.constant 0.000000e+00 : f32
      %107 = vector.broadcast %cst_40 : f32 to vector<1x128xf32>
      %c0_41 = arith.constant 0 : index
      %c0_42 = arith.constant 0 : index
      %108 = vector.load %arg5[%c0_41, %c0_42] : memref<1x128xf32, #tpu.memory_space<vmem>>, vector<1x128xf32>
      tpu.vector_store %arg5[%c0_41, %c0_42], %107 {strides = array<i32>} : memref<1x128xf32, #tpu.memory_space<vmem>>, vector<1x128xf32>,
      %c0_43 = arith.constant 0 : index
      %c0_44 = arith.constant 0 : index
      %c0_45 = arith.constant 0 : index
      %109 = vector.load %arg6[%c0_43, %c0_44, %c0_45] : memref<2x16x16xf32, #tpu.memory_space<vmem>>, vector<2x16x16xf32>
      tpu.vector_store %arg6[%c0_43, %c0_44, %c0_45], %1 {strides = array<i32>} : memref<2x16x16xf32, #tpu.memory_space<vmem>>, vector<2x16x16xf32>,
      %cst_46 = arith.constant 0.000000e+00 : f32
      %110 = vector.broadcast %cst_46 : f32 to vector<2x18x18xf32>
      %c0_47 = arith.constant 0 : index
      %c0_48 = arith.constant 0 : index
      %c0_49 = arith.constant 0 : index
      %111 = vector.load %arg7[%c0_47, %c0_48, %c0_49] : memref<2x18x18xf32, #tpu.memory_space<vmem>>, vector<2x18x18xf32>
      tpu.vector_store %arg7[%c0_47, %c0_48, %c0_49], %110 {strides = array<i32>} : memref<2x18x18xf32, #tpu.memory_space<vmem>>, vector<2x18x18xf32>,
      %112 = vector.shape_cast %2 : vector<2x16x16xf32> to vector<32x16xf32>
      %cst_50 = arith.constant dense<0.000000e+00> : vector<32x128xf32>
      %113 = tpu.matmul %112, %3, %cst_50 {dimension_numbers = #tpu.dot_dimension_numbers<[1], [0], [0], [1], [0, 0, 1, 1], [], []>} : vector<32x16xf32>, vector<16x128xf32>, vector<32x128xf32> -> vector<32x128xf32>
      %cst_51 = arith.constant dense<0.000000e+00> : vector<12x128xf32>
      %114 = tpu.matmul %4, %113, %cst_51 {dimension_numbers = #tpu.dot_dimension_numbers<[1], [0], [0], [1], [0, 0, 1, 1], [], []>} : vector<12x32xf32>, vector<32x128xf32>, vector<12x128xf32> -> vector<12x128xf32>
      %c0_52 = arith.constant 0 : index
      %c0_53 = arith.constant 0 : index
      %115 = vector.load %arg8[%c0_52, %c0_53] : memref<12x128xf32, #tpu.memory_space<vmem>>, vector<12x128xf32>
      tpu.vector_store %arg8[%c0_52, %c0_53], %114 {strides = array<i32>} : memref<12x128xf32, #tpu.memory_space<vmem>>, vector<12x128xf32>,
      %116 = arith.mulf %2, %2 : vector<2x16x16xf32>
      %117 = vector.shape_cast %116 : vector<2x16x16xf32> to vector<32x16xf32>
      %cst_54 = arith.constant dense<0.000000e+00> : vector<32x128xf32>
      %118 = tpu.matmul %117, %3, %cst_54 {dimension_numbers = #tpu.dot_dimension_numbers<[1], [0], [0], [1], [0, 0, 1, 1], [], []>} : vector<32x16xf32>, vector<16x128xf32>, vector<32x128xf32> -> vector<32x128xf32>
      %cst_55 = arith.constant dense<0.000000e+00> : vector<12x128xf32>
      %119 = tpu.matmul %4, %118, %cst_55 {dimension_numbers = #tpu.dot_dimension_numbers<[1], [0], [0], [1], [0, 0, 1, 1], [], []>} : vector<12x32xf32>, vector<32x128xf32>, vector<12x128xf32> -> vector<12x128xf32>
      %120 = arith.mulf %114, %114 : vector<12x128xf32>
      %121 = arith.subf %119, %120 : vector<12x128xf32>
      %c0_56 = arith.constant 0 : index
      %c0_57 = arith.constant 0 : index
      %122 = vector.load %arg9[%c0_56, %c0_57] : memref<12x128xf32, #tpu.memory_space<vmem>>, vector<12x128xf32>
      tpu.vector_store %arg9[%c0_56, %c0_57], %121 {strides = array<i32>} : memref<12x128xf32, #tpu.memory_space<vmem>>, vector<12x128xf32>,
    } else {
    }
    %c0_i32_11 = arith.constant 0 : i32
    %9 = arith.cmpi sgt, %arg0, %c0_i32_11 : i32
    %10 = arith.extui %9 : i1 to i32
    %c0_i32_12 = arith.constant 0 : i32
    %11 = arith.cmpi ne, %10, %c0_i32_12 : i32
    scf.if %11 {
      %c0_40 = arith.constant 0 : index
      %c0_41 = arith.constant 0 : index
      %c0_42 = arith.constant 0 : index
      %107 = vector.load %arg6[%c0_40, %c0_41, %c0_42] : memref<2x16x16xf32, #tpu.memory_space<vmem>>, vector<2x16x16xf32>
      %108 = arith.maximumf %107, %1 : vector<2x16x16xf32>
      %c0_43 = arith.constant 0 : index
      %c0_44 = arith.constant 0 : index
      %c0_45 = arith.constant 0 : index
      %109 = vector.load %arg6[%c0_43, %c0_44, %c0_45] : memref<2x16x16xf32, #tpu.memory_space<vmem>>, vector<2x16x16xf32>
      tpu.vector_store %arg6[%c0_43, %c0_44, %c0_45], %108 {strides = array<i32>} : memref<2x16x16xf32, #tpu.memory_space<vmem>>, vector<2x16x16xf32>,
    } else {
    }
    %c0_13 = arith.constant 0 : index
    %c1 = arith.constant 1 : index
    %c1_14 = arith.constant 1 : index
    %12 = vector.load %arg7[%c0_13, %c1, %c1_14] : memref<2x18x18xf32, #tpu.memory_space<vmem>>, vector<2x16x16xf32>
    tpu.vector_store %arg7[%c0_13, %c1, %c1_14], %1 {strides = array<i32>} : memref<2x18x18xf32, #tpu.memory_space<vmem>>, vector<2x16x16xf32>,
    %c0_15 = arith.constant 0 : index
    %c0_16 = arith.constant 0 : index
    %c0_17 = arith.constant 0 : index
    %13 = vector.load %arg7[%c0_15, %c0_16, %c0_17] : memref<2x18x18xf32, #tpu.memory_space<vmem>>, vector<2x18x18xf32>
    %14 = vector.extract_strided_slice %13 {offsets = [0, 1, 2], sizes = [2, 16, 16], strides = [1, 1, 1]} : vector<2x18x18xf32> to vector<2x16x16xf32>
    %15 = vector.extract_strided_slice %13 {offsets = [0, 1, 0], sizes = [2, 16, 16], strides = [1, 1, 1]} : vector<2x18x18xf32> to vector<2x16x16xf32>
    %16 = arith.subf %14, %15 : vector<2x16x16xf32>
    %17 = vector.extract_strided_slice %13 {offsets = [0, 0, 2], sizes = [2, 16, 16], strides = [1, 1, 1]} : vector<2x18x18xf32> to vector<2x16x16xf32>
    %18 = vector.extract_strided_slice %13 {offsets = [0, 0, 0], sizes = [2, 16, 16], strides = [1, 1, 1]} : vector<2x18x18xf32> to vector<2x16x16xf32>
    %19 = arith.subf %17, %18 : vector<2x16x16xf32>
    %20 = arith.addf %16, %16 : vector<2x16x16xf32>
    %21 = arith.addf %19, %20 : vector<2x16x16xf32>
    %22 = vector.extract_strided_slice %13 {offsets = [0, 2, 2], sizes = [2, 16, 16], strides = [1, 1, 1]} : vector<2x18x18xf32> to vector<2x16x16xf32>
    %23 = vector.extract_strided_slice %13 {offsets = [0, 2, 0], sizes = [2, 16, 16], strides = [1, 1, 1]} : vector<2x18x18xf32> to vector<2x16x16xf32>
    %24 = arith.subf %22, %23 : vector<2x16x16xf32>
    %25 = arith.addf %21, %24 : vector<2x16x16xf32>
    %26 = vector.extract_strided_slice %13 {offsets = [0, 0, 1], sizes = [2, 16, 16], strides = [1, 1, 1]} : vector<2x18x18xf32> to vector<2x16x16xf32>
    %27 = vector.extract_strided_slice %13 {offsets = [0, 2, 1], sizes = [2, 16, 16], strides = [1, 1, 1]} : vector<2x18x18xf32> to vector<2x16x16xf32>
    %28 = arith.subf %26, %27 : vector<2x16x16xf32>
    %29 = vector.extract_strided_slice %13 {offsets = [0, 0, 0], sizes = [2, 16, 16], strides = [1, 1, 1]} : vector<2x18x18xf32> to vector<2x16x16xf32>
    %30 = vector.extract_strided_slice %13 {offsets = [0, 2, 0], sizes = [2, 16, 16], strides = [1, 1, 1]} : vector<2x18x18xf32> to vector<2x16x16xf32>
    %31 = arith.subf %29, %30 : vector<2x16x16xf32>
    %32 = arith.addf %28, %28 : vector<2x16x16xf32>
    %33 = arith.addf %31, %32 : vector<2x16x16xf32>
    %34 = vector.extract_strided_slice %13 {offsets = [0, 0, 2], sizes = [2, 16, 16], strides = [1, 1, 1]} : vector<2x18x18xf32> to vector<2x16x16xf32>
    %35 = vector.extract_strided_slice %13 {offsets = [0, 2, 2], sizes = [2, 16, 16], strides = [1, 1, 1]} : vector<2x18x18xf32> to vector<2x16x16xf32>
    %36 = arith.subf %34, %35 : vector<2x16x16xf32>
    %37 = arith.addf %33, %36 : vector<2x16x16xf32>
    %38 = math.absf %25 : vector<2x16x16xf32>
    %39 = math.absf %37 : vector<2x16x16xf32>
    %40 = arith.addf %38, %39 : vector<2x16x16xf32>
    %41 = vector.shape_cast %40 : vector<2x16x16xf32> to vector<1x2x16x16xf32>
    %cst = arith.constant dense<0.000000e+00> : vector<1xf32>
    %42 = vector.multi_reduction <add>, %41, %cst [1, 2, 3] : vector<1x2x16x16xf32> to vector<1xf32>
    %43 = vector.shape_cast %42 : vector<1xf32> to vector<1x1x1x1xf32>
    %44 = vector.extract %43[0, 0, 0, 0] : f32 from vector<1x1x1x1xf32>
    %45 = vector.shape_cast %1 : vector<2x16x16xf32> to vector<32x16xf32>
    %cst_18 = arith.constant dense<0.000000e+00> : vector<32x128xf32>
    %46 = tpu.matmul %45, %3, %cst_18 {dimension_numbers = #tpu.dot_dimension_numbers<[1], [0], [0], [1], [0, 0, 1, 1], [], []>} : vector<32x16xf32>, vector<16x128xf32>, vector<32x128xf32> -> vector<32x128xf32>
    %cst_19 = arith.constant dense<0.000000e+00> : vector<12x128xf32>
    %47 = tpu.matmul %4, %46, %cst_19 {dimension_numbers = #tpu.dot_dimension_numbers<[1], [0], [0], [1], [0, 0, 1, 1], [], []>} : vector<12x32xf32>, vector<32x128xf32>, vector<12x128xf32> -> vector<12x128xf32>
    %c0_20 = arith.constant 0 : index
    %c0_21 = arith.constant 0 : index
    %48 = vector.load %arg8[%c0_20, %c0_21] : memref<12x128xf32, #tpu.memory_space<vmem>>, vector<12x128xf32>
    %49 = arith.mulf %1, %1 : vector<2x16x16xf32>
    %50 = vector.shape_cast %49 : vector<2x16x16xf32> to vector<32x16xf32>
    %cst_22 = arith.constant dense<0.000000e+00> : vector<32x128xf32>
    %51 = tpu.matmul %50, %3, %cst_22 {dimension_numbers = #tpu.dot_dimension_numbers<[1], [0], [0], [1], [0, 0, 1, 1], [], []>} : vector<32x16xf32>, vector<16x128xf32>, vector<32x128xf32> -> vector<32x128xf32>
    %cst_23 = arith.constant dense<0.000000e+00> : vector<12x128xf32>
    %52 = tpu.matmul %4, %51, %cst_23 {dimension_numbers = #tpu.dot_dimension_numbers<[1], [0], [0], [1], [0, 0, 1, 1], [], []>} : vector<12x32xf32>, vector<32x128xf32>, vector<12x128xf32> -> vector<12x128xf32>
    %53 = arith.mulf %47, %47 : vector<12x128xf32>
    %54 = arith.subf %52, %53 : vector<12x128xf32>
    %55 = arith.mulf %1, %2 : vector<2x16x16xf32>
    %56 = vector.shape_cast %55 : vector<2x16x16xf32> to vector<32x16xf32>
    %cst_24 = arith.constant dense<0.000000e+00> : vector<32x128xf32>
    %57 = tpu.matmul %56, %3, %cst_24 {dimension_numbers = #tpu.dot_dimension_numbers<[1], [0], [0], [1], [0, 0, 1, 1], [], []>} : vector<32x16xf32>, vector<16x128xf32>, vector<32x128xf32> -> vector<32x128xf32>
    %cst_25 = arith.constant dense<0.000000e+00> : vector<12x128xf32>
    %58 = tpu.matmul %4, %57, %cst_25 {dimension_numbers = #tpu.dot_dimension_numbers<[1], [0], [0], [1], [0, 0, 1, 1], [], []>} : vector<12x32xf32>, vector<32x128xf32>, vector<12x128xf32> -> vector<12x128xf32>
    %59 = arith.mulf %47, %48 : vector<12x128xf32>
    %60 = arith.subf %58, %59 : vector<12x128xf32>
    %c0_26 = arith.constant 0 : index
    %c0_27 = arith.constant 0 : index
    %61 = vector.load %arg9[%c0_26, %c0_27] : memref<12x128xf32, #tpu.memory_space<vmem>>, vector<12x128xf32>
    %cst_28 = arith.constant 2.000000e+00 : f32
    %62 = vector.broadcast %cst_28 : f32 to vector<12x128xf32>
    %63 = arith.mulf %62, %47 : vector<12x128xf32>
    %64 = arith.mulf %63, %48 : vector<12x128xf32>
    %cst_29 = arith.constant 9.99999974E-5 : f32
    %65 = vector.broadcast %cst_29 : f32 to vector<12x128xf32>
    %66 = arith.addf %64, %65 : vector<12x128xf32>
    %cst_30 = arith.constant 2.000000e+00 : f32
    %67 = vector.broadcast %cst_30 : f32 to vector<12x128xf32>
    %68 = arith.mulf %67, %60 : vector<12x128xf32>
    %cst_31 = arith.constant 8.99999984E-4 : f32
    %69 = vector.broadcast %cst_31 : f32 to vector<12x128xf32>
    %70 = arith.addf %68, %69 : vector<12x128xf32>
    %71 = arith.mulf %66, %70 : vector<12x128xf32>
    %72 = arith.mulf %47, %47 : vector<12x128xf32>
    %73 = arith.mulf %48, %48 : vector<12x128xf32>
    %74 = arith.addf %72, %73 : vector<12x128xf32>
    %cst_32 = arith.constant 9.99999974E-5 : f32
    %75 = vector.broadcast %cst_32 : f32 to vector<12x128xf32>
    %76 = arith.addf %74, %75 : vector<12x128xf32>
    %77 = arith.addf %54, %61 : vector<12x128xf32>
    %cst_33 = arith.constant 8.99999984E-4 : f32
    %78 = vector.broadcast %cst_33 : f32 to vector<12x128xf32>
    %79 = arith.addf %77, %78 : vector<12x128xf32>
    %80 = arith.mulf %76, %79 : vector<12x128xf32>
    %81 = arith.divf %71, %80 : vector<12x128xf32>
    %82 = vector.shape_cast %81 : vector<12x128xf32> to vector<1x12x128xf32>
    %cst_34 = arith.constant dense<0.000000e+00> : vector<1xf32>
    %83 = vector.multi_reduction <add>, %82, %cst_34 [1, 2] : vector<1x12x128xf32> to vector<1xf32>
    %84 = vector.shape_cast %83 : vector<1xf32> to vector<1x1x1xf32>
    %85 = vector.extract %84[0, 0, 0] : f32 from vector<1x1x1xf32>
    %c0_35 = arith.constant 0 : index
    %c0_36 = arith.constant 0 : index
    %86 = vector.load %arg5[%c0_35, %c0_36] : memref<1x128xf32, #tpu.memory_space<vmem>>, vector<1x128xf32>
    %c2_i32 = arith.constant 2 : i32
    %87 = arith.addi %c2_i32, %arg0 : i32
    %88 = vector.broadcast %87 : i32 to vector<1x128xi32>
    %89 = arith.cmpi eq, %5, %88 : vector<1x128xi32>
    %90 = arith.extui %89 : vector<1x128xi1> to vector<1x128xi32>
    %91 = arith.sitofp %90 : vector<1x128xi32> to vector<1x128xf32>
    %92 = vector.broadcast %44 : f32 to vector<1x128xf32>
    %93 = arith.mulf %91, %92 : vector<1x128xf32>
    %c4_i32 = arith.constant 4 : i32
    %94 = arith.addi %c4_i32, %arg0 : i32
    %95 = vector.broadcast %94 : i32 to vector<1x128xi32>
    %96 = arith.cmpi eq, %5, %95 : vector<1x128xi32>
    %97 = arith.extui %96 : vector<1x128xi1> to vector<1x128xi32>
    %98 = arith.sitofp %97 : vector<1x128xi32> to vector<1x128xf32>
    %99 = vector.broadcast %85 : f32 to vector<1x128xf32>
    %100 = arith.mulf %98, %99 : vector<1x128xf32>
    %101 = arith.addf %93, %100 : vector<1x128xf32>
    %102 = arith.addf %86, %101 : vector<1x128xf32>
    %c0_37 = arith.constant 0 : index
    %c0_38 = arith.constant 0 : index
    %103 = vector.load %arg5[%c0_37, %c0_38] : memref<1x128xf32, #tpu.memory_space<vmem>>, vector<1x128xf32>
    tpu.vector_store %arg5[%c0_37, %c0_38], %102 {strides = array<i32>} : memref<1x128xf32, #tpu.memory_space<vmem>>, vector<1x128xf32>,
    %c1_i32 = arith.constant 1 : i32
    %104 = arith.cmpi eq, %arg0, %c1_i32 : i32
    %105 = arith.extui %104 : i1 to i32
    %c0_i32_39 = arith.constant 0 : i32
    %106 = arith.cmpi ne, %105, %c0_i32_39 : i32
    scf.if %106 {
      %c0_40 = arith.constant 0 : index
      %c0_41 = arith.constant 0 : index
      %c0_42 = arith.constant 0 : index
      %107 = vector.load %arg6[%c0_40, %c0_41, %c0_42] : memref<2x16x16xf32, #tpu.memory_space<vmem>>, vector<2x16x16xf32>
      %108 = arith.subf %2, %107 : vector<2x16x16xf32>
      %109 = math.absf %108 : vector<2x16x16xf32>
      %110 = vector.shape_cast %109 : vector<2x16x16xf32> to vector<1x2x16x16xf32>
      %cst_43 = arith.constant dense<0.000000e+00> : vector<1xf32>
      %111 = vector.multi_reduction <add>, %110, %cst_43 [1, 2, 3] : vector<1x2x16x16xf32> to vector<1xf32>
      %112 = vector.shape_cast %111 : vector<1xf32> to vector<1x1x1x1xf32>
      %113 = vector.extract %112[0, 0, 0, 0] : f32 from vector<1x1x1x1xf32>
      %c0_44 = arith.constant 0 : index
      %c1_45 = arith.constant 1 : index
      %c1_46 = arith.constant 1 : index
      %114 = vector.load %arg7[%c0_44, %c1_45, %c1_46] : memref<2x18x18xf32, #tpu.memory_space<vmem>>, vector<2x16x16xf32>
      tpu.vector_store %arg7[%c0_44, %c1_45, %c1_46], %2 {strides = array<i32>} : memref<2x18x18xf32, #tpu.memory_space<vmem>>, vector<2x16x16xf32>,
      %c0_47 = arith.constant 0 : index
      %c0_48 = arith.constant 0 : index
      %c0_49 = arith.constant 0 : index
      %115 = vector.load %arg7[%c0_47, %c0_48, %c0_49] : memref<2x18x18xf32, #tpu.memory_space<vmem>>, vector<2x18x18xf32>
      %116 = vector.extract_strided_slice %115 {offsets = [0, 1, 2], sizes = [2, 16, 16], strides = [1, 1, 1]} : vector<2x18x18xf32> to vector<2x16x16xf32>
      %117 = vector.extract_strided_slice %115 {offsets = [0, 1, 0], sizes = [2, 16, 16], strides = [1, 1, 1]} : vector<2x18x18xf32> to vector<2x16x16xf32>
      %118 = arith.subf %116, %117 : vector<2x16x16xf32>
      %119 = vector.extract_strided_slice %115 {offsets = [0, 0, 2], sizes = [2, 16, 16], strides = [1, 1, 1]} : vector<2x18x18xf32> to vector<2x16x16xf32>
      %120 = vector.extract_strided_slice %115 {offsets = [0, 0, 0], sizes = [2, 16, 16], strides = [1, 1, 1]} : vector<2x18x18xf32> to vector<2x16x16xf32>
      %121 = arith.subf %119, %120 : vector<2x16x16xf32>
      %122 = arith.addf %118, %118 : vector<2x16x16xf32>
      %123 = arith.addf %121, %122 : vector<2x16x16xf32>
      %124 = vector.extract_strided_slice %115 {offsets = [0, 2, 2], sizes = [2, 16, 16], strides = [1, 1, 1]} : vector<2x18x18xf32> to vector<2x16x16xf32>
      %125 = vector.extract_strided_slice %115 {offsets = [0, 2, 0], sizes = [2, 16, 16], strides = [1, 1, 1]} : vector<2x18x18xf32> to vector<2x16x16xf32>
      %126 = arith.subf %124, %125 : vector<2x16x16xf32>
      %127 = arith.addf %123, %126 : vector<2x16x16xf32>
      %128 = vector.extract_strided_slice %115 {offsets = [0, 0, 1], sizes = [2, 16, 16], strides = [1, 1, 1]} : vector<2x18x18xf32> to vector<2x16x16xf32>
      %129 = vector.extract_strided_slice %115 {offsets = [0, 2, 1], sizes = [2, 16, 16], strides = [1, 1, 1]} : vector<2x18x18xf32> to vector<2x16x16xf32>
      %130 = arith.subf %128, %129 : vector<2x16x16xf32>
      %131 = vector.extract_strided_slice %115 {offsets = [0, 0, 0], sizes = [2, 16, 16], strides = [1, 1, 1]} : vector<2x18x18xf32> to vector<2x16x16xf32>
      %132 = vector.extract_strided_slice %115 {offsets = [0, 2, 0], sizes = [2, 16, 16], strides = [1, 1, 1]} : vector<2x18x18xf32> to vector<2x16x16xf32>
      %133 = arith.subf %131, %132 : vector<2x16x16xf32>
      %134 = arith.addf %130, %130 : vector<2x16x16xf32>
      %135 = arith.addf %133, %134 : vector<2x16x16xf32>
      %136 = vector.extract_strided_slice %115 {offsets = [0, 0, 2], sizes = [2, 16, 16], strides = [1, 1, 1]} : vector<2x18x18xf32> to vector<2x16x16xf32>
      %137 = vector.extract_strided_slice %115 {offsets = [0, 2, 2], sizes = [2, 16, 16], strides = [1, 1, 1]} : vector<2x18x18xf32> to vector<2x16x16xf32>
      %138 = arith.subf %136, %137 : vector<2x16x16xf32>
      %139 = arith.addf %135, %138 : vector<2x16x16xf32>
      %140 = math.absf %127 : vector<2x16x16xf32>
      %141 = math.absf %139 : vector<2x16x16xf32>
      %142 = arith.addf %140, %141 : vector<2x16x16xf32>
      %143 = arith.subf %142, %107 : vector<2x16x16xf32>
      %144 = math.absf %143 : vector<2x16x16xf32>
      %145 = vector.shape_cast %144 : vector<2x16x16xf32> to vector<1x2x16x16xf32>
      %cst_50 = arith.constant dense<0.000000e+00> : vector<1xf32>
      %146 = vector.multi_reduction <add>, %145, %cst_50 [1, 2, 3] : vector<1x2x16x16xf32> to vector<1xf32>
      %147 = vector.shape_cast %146 : vector<1xf32> to vector<1x1x1x1xf32>
      %148 = vector.extract %147[0, 0, 0, 0] : f32 from vector<1x1x1x1xf32>
      %c0_51 = arith.constant 0 : index
      %c0_52 = arith.constant 0 : index
      %149 = vector.load %arg5[%c0_51, %c0_52] : memref<1x128xf32, #tpu.memory_space<vmem>>, vector<1x128xf32>
      %c0_i32_53 = arith.constant 0 : i32
      %150 = vector.broadcast %c0_i32_53 : i32 to vector<1x128xi32>
      %151 = arith.cmpi eq, %5, %150 : vector<1x128xi32>
      %152 = arith.extui %151 : vector<1x128xi1> to vector<1x128xi32>
      %153 = arith.sitofp %152 : vector<1x128xi32> to vector<1x128xf32>
      %154 = vector.broadcast %113 : f32 to vector<1x128xf32>
      %155 = arith.mulf %153, %154 : vector<1x128xf32>
      %c1_i32_54 = arith.constant 1 : i32
      %156 = vector.broadcast %c1_i32_54 : i32 to vector<1x128xi32>
      %157 = arith.cmpi eq, %5, %156 : vector<1x128xi32>
      %158 = arith.extui %157 : vector<1x128xi1> to vector<1x128xi32>
      %159 = arith.sitofp %158 : vector<1x128xi32> to vector<1x128xf32>
      %160 = vector.broadcast %148 : f32 to vector<1x128xf32>
      %161 = arith.mulf %159, %160 : vector<1x128xf32>
      %162 = arith.addf %155, %161 : vector<1x128xf32>
      %163 = arith.addf %149, %162 : vector<1x128xf32>
      %c0_55 = arith.constant 0 : index
      %c0_56 = arith.constant 0 : index
      %164 = vector.load %arg5[%c0_55, %c0_56] : memref<1x128xf32, #tpu.memory_space<vmem>>, vector<1x128xf32>
      tpu.vector_store %arg5[%c0_55, %c0_56], %163 {strides = array<i32>} : memref<1x128xf32, #tpu.memory_space<vmem>>, vector<1x128xf32>,
    } else {
    }
    return
  }
  func.func @transform_0(%arg0: i32) -> (i32, i32, i32, i32) {
    %c0_i32 = arith.constant 0 : i32
    %c0_i32_0 = arith.constant 0 : i32
    %c0_i32_1 = arith.constant 0 : i32
    %c0_i32_2 = arith.constant 0 : i32
    return %arg0, %c0_i32, %c0_i32_0, %c0_i32_1 : i32, i32, i32, i32
  }
  func.func @transform_1(%arg0: i32) -> (i32, i32, i32) {
    %c0_i32 = arith.constant 0 : i32
    %c0_i32_0 = arith.constant 0 : i32
    %c0_i32_1 = arith.constant 0 : i32
    %c0_i32_2 = arith.constant 0 : i32
    return %c0_i32, %c0_i32_0, %c0_i32_1 : i32, i32, i32
  }
  func.func @transform_2(%arg0: i32) -> (i32, i32) {
    %c0_i32 = arith.constant 0 : i32
    %c0_i32_0 = arith.constant 0 : i32
    %c0_i32_1 = arith.constant 0 : i32
    return %c0_i32, %c0_i32_0 : i32, i32
  }
  func.func @transform_3(%arg0: i32) -> (i32, i32) {
    %c0_i32 = arith.constant 0 : i32
    %c0_i32_0 = arith.constant 0 : i32
    %c0_i32_1 = arith.constant 0 : i32
    return %c0_i32, %c0_i32_0 : i32, i32
  }
  func.func @transform_4(%arg0: i32) -> (i32, i32) {
    %c0_i32 = arith.constant 0 : i32
    %c0_i32_0 = arith.constant 0 : i32
    %c0_i32_1 = arith.constant 0 : i32
    return %c0_i32, %c0_i32_0 : i32, i32
  }
}

</mosaic_0001>

<llo_original>
// kernel: tpu_custom_call.1
$region0: #{tpu_custom_call.1}
  #allocation0 [shape = 'u32[]', space=smem, size = 0x4, offset = 0x4, fixed_abs, tag = 'smem constant byte address 0x4 - core index']
  #allocation1 [shape = 'u32[144,128]{1,0:T(1,128)}', space=vmem, size = 0x12000, scoped, tag = 'internal scratch']
  #allocation2 [shape = 'f32[2,16,16]{2,1,0:T(8,128)}', space=vmem, size = 0x4000, scoped, tag = 'scratch operand']
  #allocation3 [shape = 'f32[2,18,18]{2,1,0:T(8,128)}', space=vmem, size = 0x6000, scoped, tag = 'scratch operand']
  #allocation4 [shape = 'f32[12,128]{1,0:T(8,128)}', space=vmem, size = 0x2000, scoped, tag = 'scratch operand']
  #allocation5 [shape = 'f32[12,128]{1,0:T(8,128)}', space=vmem, size = 0x2000, scoped, tag = 'scratch operand']
  %s0 = inlined_call_operand.hbm [shape: f32[2,2,16,16], index: 0, kind: input, shape index: {}]
  %s1 = inlined_call_operand.hbm [shape: f32[2,16,16], index: 1, kind: input, shape index: {}]
  %s2 = inlined_call_operand.hbm [shape: f32[16,128], index: 2, kind: input, shape index: {}]
  %s3 = inlined_call_operand.hbm [shape: f32[12,32], index: 3, kind: input, shape index: {}]
  %s4 = inlined_call_operand.hbm [shape: f32[1,128], index: 4, kind: output, shape index: {}]
  %s5 = sld [smem:[#allocation0]]
  $region77: #{tpu_custom_call.1} parent=0
    _
  %s7 = ssub.s32 1, %s5
  %s8 = scalar_select 0, %s7, %s5
  $region1: #{tpu_custom_call.1} parent=0
    #allocation6 [shape = 'u8[32768]{0}', space=vmem, size = 0x8000, scoped, tag = 'input window, operand 0']
    #allocation7 [shape = 's32[2]{0}', space=sflag, size = 0x8, scoped, tag = 'scoped memory for tpu_custom_call.1']
    #allocation8 [shape = 's32[2]{0}', space=sflag, size = 0x8, scoped, tag = 'scoped memory for tpu_custom_call.1']
    #allocation9 [shape = 'u8[16384]{0}', space=vmem, size = 0x4000, scoped, tag = 'input window, operand 1, single buffered']
    #allocation10 [shape = 's32[1]{0}', space=sflag, size = 0x4, scoped, tag = 'scoped memory for tpu_custom_call.1']
    #allocation11 [shape = 'u8[8192]{0}', space=vmem, size = 0x2000, scoped, tag = 'input window, operand 2, single buffered']
    #allocation12 [shape = 'u8[8192]{0}', space=vmem, size = 0x2000, scoped, tag = 'input window, operand 3, single buffered']
    #allocation13 [shape = 's32[1]{0}', space=sflag, size = 0x4, scoped, tag = 'scoped memory for tpu_custom_call.1']
    #allocation14 [shape = 'u8[512]{0}', space=vmem, size = 0x400, scoped, tag = 'output window, operand 0, single buffered']
    %9 = vsyncpa [#allocation7], 0
    %s10 = scalar_lea.sflag [#allocation7], 1
    %11 = vsyncpa %s10, 0
    %12 = vsyncpa [#allocation10], 0
    %13 = vsyncpa [#allocation13], 0
    %14 = vsyncpa [#allocation8], 0
    loop: start=0, step=1, limit=4
    $region2: #{tpu_custom_call.1} parent=1 // loop_pre_header
      _
    $region3: #{tpu_custom_call.1} parent=1 // loop_header
      %s16 = sphi 0, %s20
      %p17 = scmp.ge.s32.totalorder %s16, 4
      %s26 = sphi 0, %s28
      %s29 = sphi 0, %s26
      %s30 = sphi 0, %s29
      %s46 = sphi 0, %s30
      %s50 = sphi 0, %s50
      %s52 = sphi 0, %s50
      %s53 = sphi 0, %s52
      %s67 = sphi 0, %s53
      %s71 = sphi 0, %s71
      %s73 = sphi 0, %s71
      %s74 = sphi 0, %s73
      %s88 = sphi 0, %s74
      %s92 = sphi 0, %s92
      %s94 = sphi 0, %s92
      %s95 = sphi 0, %s94
      %s109 = sphi 0, %s95
      %s113 = sphi 0, %s113
      %s115 = sphi 0, %s113
      %s116 = sphi 0, %s115
      %s130 = sphi 0, %s116
    $region4: #{tpu_custom_call.1} parent=1 // loop_header_branch
      %19 = sbr.rel (%p17) target = $region8
    $region5: #{tpu_custom_call.1} parent=1 // loop_body
      %s21 = ssub.s32 %s16, 1
      %s22 = ssub.s32 %s16, 2
      %s23 = sadd.s32 %s16, 1
      %s24 = ssub.s32 %s16, %s23
      %p25 = scmp.eq.s32.totalorder %s24, 0
      %s27 = sadd.s32 %s26, 1
      %s28 = scalar_select %p25, %s26, %s27
      %p31 = pneg %p25
      %p32 = scmp.eq.s32.totalorder %s16, 1
      %p33 = por %p31, %p32
      %p34 = scmp.ne.s32.totalorder %s26, %s29
      %p35 = scmp.eq.s32.totalorder %s16, 0
      %p36 = por %p34, %p35
      %p37 = scmp.ne.s32.totalorder %s26, %s29
      %p38 = scmp.eq.s32.totalorder %s21, 1
      %p39 = por %p37, %p38
      %p40 = scmp.ne.s32.totalorder %s29, %s30
      %p41 = scmp.eq.s32.totalorder %s21, 0
      %p42 = por %p40, %p41
      %p43 = scmp.ne.s32.totalorder %s29, %s30
      %p44 = scmp.eq.s32.totalorder %s22, 1
      %p45 = por %p43, %p44
      %p47 = scmp.ne.s32.totalorder %s30, %s46
      %p48 = scmp.eq.s32.totalorder %s22, 0
      %p49 = por %p47, %p48
      %s51 = sadd.s32 %s50, 1
      %p54 = scmp.eq.s32.totalorder %s16, 1
      %p55 = scmp.ne.s32.totalorder %s50, %s52
      %p56 = scmp.eq.s32.totalorder %s16, 0
      %p57 = por %p55, %p56
      %p58 = scmp.ne.s32.totalorder %s50, %s52
      %p59 = scmp.eq.s32.totalorder %s21, 1
      %p60 = por %p58, %p59
      %p61 = scmp.ne.s32.totalorder %s52, %s53
      %p62 = scmp.eq.s32.totalorder %s21, 0
      %p63 = por %p61, %p62
      %p64 = scmp.ne.s32.totalorder %s52, %s53
      %p65 = scmp.eq.s32.totalorder %s22, 1
      %p66 = por %p64, %p65
      %p68 = scmp.ne.s32.totalorder %s53, %s67
      %p69 = scmp.eq.s32.totalorder %s22, 0
      %p70 = por %p68, %p69
      %s72 = sadd.s32 %s71, 1
      %p75 = scmp.eq.s32.totalorder %s16, 1
      %p76 = scmp.ne.s32.totalorder %s71, %s73
      %p77 = scmp.eq.s32.totalorder %s16, 0
      %p78 = por %p76, %p77
      %p79 = scmp.ne.s32.totalorder %s71, %s73
      %p80 = scmp.eq.s32.totalorder %s21, 1
      %p81 = por %p79, %p80
      %p82 = scmp.ne.s32.totalorder %s73, %s74
      %p83 = scmp.eq.s32.totalorder %s21, 0
      %p84 = por %p82, %p83
      %p85 = scmp.ne.s32.totalorder %s73, %s74
      %p86 = scmp.eq.s32.totalorder %s22, 1
      %p87 = por %p85, %p86
      %p89 = scmp.ne.s32.totalorder %s74, %s88
      %p90 = scmp.eq.s32.totalorder %s22, 0
      %p91 = por %p89, %p90
      %s93 = sadd.s32 %s92, 1
      %p96 = scmp.eq.s32.totalorder %s16, 1
      %p97 = scmp.ne.s32.totalorder %s92, %s94
      %p98 = scmp.eq.s32.totalorder %s16, 0
      %p99 = por %p97, %p98
      %p100 = scmp.ne.s32.totalorder %s92, %s94
      %p101 = scmp.eq.s32.totalorder %s21, 1
      %p102 = por %p100, %p101
      %p103 = scmp.ne.s32.totalorder %s94, %s95
      %p104 = scmp.eq.s32.totalorder %s21, 0
      %p105 = por %p103, %p104
      %p106 = scmp.ne.s32.totalorder %s94, %s95
      %p107 = scmp.eq.s32.totalorder %s22, 1
      %p108 = por %p106, %p107
      %p110 = scmp.ne.s32.totalorder %s95, %s109
      %p111 = scmp.eq.s32.totalorder %s22, 0
      %p112 = por %p110, %p111
      %s114 = sadd.s32 %s113, 1
      %p117 = scmp.eq.s32.totalorder %s16, 1
      %p118 = scmp.ne.s32.totalorder %s113, %s115
      %p119 = scmp.eq.s32.totalorder %s16, 0
      %p120 = por %p118, %p119
      %p121 = scmp.ne.s32.totalorder %s113, %s115
      %p122 = scmp.eq.s32.totalorder %s21, 1
      %p123 = por %p121, %p122
      %p124 = scmp.ne.s32.totalorder %s115, %s116
      %p125 = scmp.eq.s32.totalorder %s21, 0
      %p126 = por %p124, %p125
      %p127 = scmp.ne.s32.totalorder %s115, %s116
      %p128 = scmp.eq.s32.totalorder %s22, 1
      %p129 = por %p127, %p128
      %p131 = scmp.ne.s32.totalorder %s116, %s130
      %p132 = scmp.eq.s32.totalorder %s22, 0
      %p133 = por %p131, %p132
      %p134 = scmp.le.s32.totalorder 1, %s16
      %p135 = scmp.lt.s32.totalorder %s16, 3
      %p136 = pnand %p134, %p135
      %p137 = pneg %p136
      // Predicated region
      $region9: #{tpu_custom_call.1} parent=5 // pred_check
        _
      $region10: #{tpu_custom_call.1} parent=5 // pred_check_branch
        %139 = sbr.rel (%p136) target = $region12
      $region11: #{tpu_custom_call.1} parent=5 // pred_region
        %s140 = ssub.s32 %s16, 1
        // Predicated region
        $region13: #{tpu_custom_call.1} parent=11 // pred_check
          %p141 = pneg %p63
        $region14: #{tpu_custom_call.1} parent=11 // pred_check_branch
          %143 = sbr.rel (%p141) target = $region16
        $region15: #{tpu_custom_call.1} parent=11 // pred_region
          %s145 = ssub.s32 512, 512
          %146 = vsyncadd [#allocation10], %s145
          %s147 = sshll.u32 [#allocation9], 4
          %s148 = int_to_ptr.vmem [resolvable:$true] %s147
          %153 = dma.hbm_to_vmem [thread:$0]  %s1, 512, %s148, [#allocation10], 128, 128, 8
        $region16: #{tpu_custom_call.1} parent=11 // pred_fallthru
          _
        // Predicated region
        $region17: #{tpu_custom_call.1} parent=11 // pred_check
          %p154 = pneg %p84
        $region18: #{tpu_custom_call.1} parent=11 // pred_check_branch
          %156 = sbr.rel (%p154) target = $region20
        $region19: #{tpu_custom_call.1} parent=11 // pred_region
          %s158 = ssub.s32 256, 256
          %159 = vsyncadd [#allocation10], %s158
          %s160 = sshll.u32 [#allocation11], 4
          %s161 = int_to_ptr.vmem [resolvable:$true] %s160
          %166 = dma.hbm_to_vmem [thread:$0]  %s2, 256, %s161, [#allocation10], 128, 128, 8
        $region20: #{tpu_custom_call.1} parent=11 // pred_fallthru
          _
        // Predicated region
        $region21: #{tpu_custom_call.1} parent=11 // pred_check
          %p167 = pneg %p105
        $region22: #{tpu_custom_call.1} parent=11 // pred_check_branch
          %169 = sbr.rel (%p167) target = $region24
        $region23: #{tpu_custom_call.1} parent=11 // pred_region
          %s171 = ssub.s32 256, 256
          %172 = vsyncadd [#allocation13], %s171
          %s173 = sshll.u32 [#allocation12], 4
          %s174 = int_to_ptr.vmem [resolvable:$true] %s173
          %179 = dma.hbm_to_vmem [thread:$0]  %s3, 256, %s174, [#allocation13], 128, 128, 8
        $region24: #{tpu_custom_call.1} parent=11 // pred_fallthru
          _
      $region12: #{tpu_custom_call.1} parent=5 // pred_fallthru
        _
      %p180 = scmp.lt.s32.totalorder %s16, 2
      // Predicated region
      $region25: #{tpu_custom_call.1} parent=5 // pred_check
        %p181 = pneg %p180
      $region26: #{tpu_custom_call.1} parent=5 // pred_check_branch
        %183 = sbr.rel (%p181) target = $region28
      $region27: #{tpu_custom_call.1} parent=5 // pred_region
        // Predicated region
        $region29: #{tpu_custom_call.1} parent=27 // pred_check
          %p184 = pneg %p36
        $region30: #{tpu_custom_call.1} parent=27 // pred_check_branch
          %186 = sbr.rel (%p184) target = $region32
        $region31: #{tpu_custom_call.1} parent=27 // pred_region
          %s187 = sand.u32 %s26, 1
          %s188 = scalar_lea.sflag [#allocation7], %s187
          %s189 = sand.u32 %s26, 1
          %s190 = smul.addr %s189, 32
          %s191 = scalar_lea.vmem [#allocation6], %s190
          %s193 = ssub.s32 512, 512
          %194 = vsyncadd %s188, %s193
          %s195 = smul.addr %s16, 4
          %s196 = smul.addr %s195, 128
          %s197 = scalar_lea.hbm %s0, %s196
          %s198 = sshll.u32 %s191, 4
          %s199 = int_to_ptr.vmem [resolvable:$true] %s198
          %204 = dma.hbm_to_vmem [thread:$0]  %s197, 512, %s199, %s188, 128, 128, 8
        $region32: #{tpu_custom_call.1} parent=27 // pred_fallthru
          _
      $region28: #{tpu_custom_call.1} parent=5 // pred_fallthru
        _
      %p205 = scmp.le.s32.totalorder 1, %s16
      %p206 = scmp.lt.s32.totalorder %s16, 3
      %p207 = pnand %p205, %p206
      %p208 = pneg %p207
      // Predicated region
      $region33: #{tpu_custom_call.1} parent=5 // pred_check
        _
      $region34: #{tpu_custom_call.1} parent=5 // pred_check_branch
        %210 = sbr.rel (%p207) target = $region36
      $region35: #{tpu_custom_call.1} parent=5 // pred_region
        %s211 = ssub.s32 %s16, 1
        %s212 = sand.u32 %s29, 1
        %s213 = scalar_lea.sflag [#allocation7], %s212
        %s214 = sand.u32 %s29, 1
        %s215 = smul.addr %s214, 32
        %s216 = scalar_lea.vmem [#allocation6], %s215
        // Predicated region
        $region37: #{tpu_custom_call.1} parent=35 // pred_check
          %p217 = pneg %p42
        $region38: #{tpu_custom_call.1} parent=35 // pred_check_branch
          %219 = sbr.rel (%p217) target = $region40
        $region39: #{tpu_custom_call.1} parent=35 // pred_region
          %220 = dma.done %s213, 512
        $region40: #{tpu_custom_call.1} parent=35 // pred_fallthru
          _
        // Predicated region
        $region41: #{tpu_custom_call.1} parent=35 // pred_check
          %p221 = pneg %p63
        $region42: #{tpu_custom_call.1} parent=35 // pred_check_branch
          %223 = sbr.rel (%p221) target = $region44
        $region43: #{tpu_custom_call.1} parent=35 // pred_region
          %224 = dma.done [#allocation10], 512
        $region44: #{tpu_custom_call.1} parent=35 // pred_fallthru
          _
        // Predicated region
        $region45: #{tpu_custom_call.1} parent=35 // pred_check
          %p225 = pneg %p84
        $region46: #{tpu_custom_call.1} parent=35 // pred_check_branch
          %227 = sbr.rel (%p225) target = $region48
        $region47: #{tpu_custom_call.1} parent=35 // pred_region
          %228 = dma.done [#allocation10], 256
        $region48: #{tpu_custom_call.1} parent=35 // pred_fallthru
          _
        // Predicated region
        $region49: #{tpu_custom_call.1} parent=35 // pred_check
          %p229 = pneg %p105
        $region50: #{tpu_custom_call.1} parent=35 // pred_check_branch
          %231 = sbr.rel (%p229) target = $region52
        $region51: #{tpu_custom_call.1} parent=35 // pred_region
          %232 = dma.done [#allocation13], 256
        $region52: #{tpu_custom_call.1} parent=35 // pred_fallthru
          _
        %s233 = sand.u32 %s29, 1
        %s234 = scalar_lea.sflag [#allocation7], %s233
        %s235 = sand.u32 %s29, 1
        %s236 = smul.addr %s235, 32
        %s237 = scalar_lea.vmem [#allocation6], %s236
        %p238 = pneg %p42
        %p239 = pneg %p39
        %p240 = pneg %p63
        %p241 = pneg %p60
        %p242 = pneg %p84
        %p243 = pneg %p81
        %p244 = pneg %p105
        %p245 = pneg %p102
        %p246 = pneg %p126
        %p247 = pneg %p123
        %v248 = vld [vmem:[%s216] sm:$0xff]
        %v249 = vld [vmem:[%s216 + $0x8] sm:$0xff]
        %v250 = vld [vmem:[%s216 + $0x10] sm:$0xff]
        %v251 = vld [vmem:[%s216 + $0x18] sm:$0xff]
        %v252 = vld [vmem:[#allocation9] sm:$0xff]
        %v253 = vld [vmem:[#allocation9 + $0x8] sm:$0xff]
        %v254 = vld [vmem:[#allocation9 + $0x10] sm:$0xff]
        %v255 = vld [vmem:[#allocation9 + $0x18] sm:$0xff]
        %v256 = vld [vmem:[#allocation11] sm:$0xff]
        %v257 = vld [vmem:[#allocation11 + $0x8] sm:$0xff]
        %v258 = vld [vmem:[#allocation12] sm:$0xff]
        %v259 = vld [vmem:[#allocation12 + $0x8] sm:$0xf]
        %v260 = vlaneseq
        %v261 = vand.u32 %v260, 127
        %p262 = scmp.eq.s32.totalorder %s21, 0
        // Predicated region
        $region53: #{tpu_custom_call.1} parent=35 // pred_check
          %p263 = pneg %p262
        $region54: #{tpu_custom_call.1} parent=35 // pred_check_branch
          %265 = sbr.rel (%p263) target = $region56
        $region55: #{tpu_custom_call.1} parent=35 // pred_region
          %266 = vst [vmem:[#allocation14] sm:$0x1] 0.0
          %vm267 = vcmask 130048
          %268 = vst.msk [vmem:[#allocation2] sm:$0xff] %vm267, %v248
          %269 = vst.msk [vmem:[#allocation2 + $0x8] sm:$0xff] %vm267, %v249
          %270 = vst.msk [vmem:[#allocation2 + $0x10] sm:$0xff] %vm267, %v250
          %271 = vst.msk [vmem:[#allocation2 + $0x18] sm:$0xff] %vm267, %v251
          %vm272 = vcmask 146432
          %273 = vst.msk [vmem:[#allocation3] sm:$0xff] %vm272, 0.0
          %274 = vst.msk [vmem:[#allocation3 + $0x8] sm:$0xff] %vm272, 0.0
          %vm275 = vcmask 140288
          %276 = vst.msk [vmem:[#allocation3 + $0x10] sm:$0x3] %vm275, 0.0
          %277 = vst.msk [vmem:[#allocation3 + $0x18] sm:$0xff] %vm272, 0.0
          %278 = vst.msk [vmem:[#allocation3 + $0x20] sm:$0xff] %vm272, 0.0
          %279 = vst.msk [vmem:[#allocation3 + $0x28] sm:$0x3] %vm275, 0.0
          %v281 = vsel %vm267, %v252, 0
          %v284 = vsel %vm267, %v253, 0
          %v287 = vsel %vm267, %v254, 0
          %v290 = vsel %vm267, %v255, 0
          %292 = vmatprep.subr.mxu0 0.0
          %293 = vmatpush1.msra.mxu0 0.0
          %294 = vmatprep.subr.mxu0 0.0
          %295 = vmatpush1.msra.mxu0 0.0
          %296 = vmatprep.subr.mxu0 0.0
          %297 = vmatpush1.msra.mxu0 0.0
          %298 = vmatprep.subr.mxu0 0.0
          %299 = vmatpush1.msra.mxu0 0.0
          %300 = vmatprep.subr.mxu0 0.0
          %301 = vmatpush1.msra.mxu0 0.0
          %302 = vmatprep.subr.mxu0 0.0
          %303 = vmatpush1.msra.mxu0 0.0
          %304 = vmatprep.subr.mxu0 0.0
          %305 = vmatpush1.msra.mxu0 0.0
          %306 = vmatprep.subr.mxu0 0.0
          %307 = vmatpush1.msra.mxu0 0.0
          %308 = vmatprep.subr.mxu0 0.0
          %309 = vmatpush1.msra.mxu0 0.0
          %310 = vmatprep.subr.mxu0 0.0
          %311 = vmatpush1.msra.mxu0 0.0
          %312 = vmatprep.subr.mxu0 0.0
          %313 = vmatpush1.msra.mxu0 0.0
          %314 = vmatprep.subr.mxu0 0.0
          %315 = vmatpush1.msra.mxu0 0.0
          %316 = vmatprep.subr.mxu0 0.0
          %317 = vmatpush1.msra.mxu0 0.0
          %318 = vmatprep.subr.mxu0 0.0
          %319 = vmatpush1.msra.mxu0 0.0
          %320 = vmatprep.subr.mxu0 0.0
          %321 = vmatpush1.msra.mxu0 %v257
          %322 = vmatprep.subr.mxu0 0.0
          %323 = vmatpush1.msra.mxu0 %v256
          %324 = vmatprep.subr.mxu0 0.0
          %325 = vmatpush2.msra.mxu0 0.0
          %326 = vmatprep.subr.mxu0 0.0
          %327 = vmatpush2.msra.mxu0 0.0
          %328 = vmatprep.subr.mxu0 0.0
          %329 = vmatpush2.msra.mxu0 0.0
          %330 = vmatprep.subr.mxu0 0.0
          %331 = vmatpush2.msra.mxu0 0.0
          %332 = vmatprep.subr.mxu0 0.0
          %333 = vmatpush2.msra.mxu0 0.0
          %334 = vmatprep.subr.mxu0 0.0
          %335 = vmatpush2.msra.mxu0 0.0
          %336 = vmatprep.subr.mxu0 0.0
          %337 = vmatpush2.msra.mxu0 0.0
          %338 = vmatprep.subr.mxu0 0.0
          %339 = vmatpush2.msra.mxu0 0.0
          %340 = vmatprep.subr.mxu0 0.0
          %341 = vmatpush2.msra.mxu0 0.0
          %342 = vmatprep.subr.mxu0 0.0
          %343 = vmatpush2.msra.mxu0 0.0
          %344 = vmatprep.subr.mxu0 0.0
          %345 = vmatpush2.msra.mxu0 0.0
          %346 = vmatprep.subr.mxu0 0.0
          %347 = vmatpush2.msra.mxu0 0.0
          %348 = vmatprep.subr.mxu0 0.0
          %349 = vmatpush2.msra.mxu0 0.0
          %350 = vmatprep.subr.mxu0 0.0
          %351 = vmatpush2.msra.mxu0 0.0
          %352 = vmatprep.subr.mxu0 0.0
          %353 = vmatpush2.msra.mxu0 0.0
          %354 = vmatprep.subr.mxu0 0.0
          %355 = vmatpush2.msra.mxu0 0.0
          %356 = vmatprep.mubr.f32.mxu0 0.0
          %357 = vmatmul.mubr.f32.gmra.mxu0 %v281
          %v358 = vpop.f32.mrf.mxu0
          %v359 = vadd.f32 0.0, %v358
          %v360 = vpop.f32.mrf.mxu0
          %361 = vmatprep.mubr.f32.mxu0 0.0
          %362 = vmatmul.mubr.f32.gmra.mxu0 %v284
          %v363 = vpop.f32.mrf.mxu0
          %v364 = vadd.f32 0.0, %v363
          %v365 = vpop.f32.mrf.mxu0
          %366 = vmatprep.mubr.f32.mxu0 0.0
          %367 = vmatmul.mubr.f32.gmra.mxu0 %v287
          %v368 = vpop.f32.mrf.mxu0
          %v369 = vadd.f32 0.0, %v368
          %v370 = vpop.f32.mrf.mxu0
          %371 = vmatprep.mubr.f32.mxu0 0.0
          %372 = vmatmul.mubr.f32.gmra.mxu0 %v290
          %v373 = vpop.f32.mrf.mxu0
          %v374 = vadd.f32 0.0, %v373
          %v375 = vpop.f32.mrf.mxu0
          %376 = vdwg.mxu0
          %vm377 = vcmask 261120
          %v379 = vsel %vm377, %v258, 0
          %v382 = vsel %vm377, %v259, 0
          %384 = vmatprep.subr.mxu0 0.0
          %385 = vmatpush1.msra.mxu0 0.0
          %386 = vmatprep.subr.mxu0 0.0
          %387 = vmatpush1.msra.mxu0 0.0
          %388 = vmatprep.subr.mxu0 0.0
          %389 = vmatpush1.msra.mxu0 0.0
          %390 = vmatprep.subr.mxu0 0.0
          %391 = vmatpush1.msra.mxu0 0.0
          %392 = vmatprep.subr.mxu0 0.0
          %393 = vmatpush1.msra.mxu0 0.0
          %394 = vmatprep.subr.mxu0 0.0
          %395 = vmatpush1.msra.mxu0 0.0
          %396 = vmatprep.subr.mxu0 0.0
          %397 = vmatpush1.msra.mxu0 0.0
          %398 = vmatprep.subr.mxu0 0.0
          %399 = vmatpush1.msra.mxu0 0.0
          %400 = vmatprep.subr.mxu0 0.0
          %401 = vmatpush1.msra.mxu0 0.0
          %402 = vmatprep.subr.mxu0 0.0
          %403 = vmatpush1.msra.mxu0 0.0
          %404 = vmatprep.subr.mxu0 0.0
          %405 = vmatpush1.msra.mxu0 0.0
          %406 = vmatprep.subr.mxu0 0.0
          %407 = vmatpush1.msra.mxu0 0.0
          %408 = vmatprep.subr.mxu0 0.0
          %409 = vmatpush1.msra.mxu0 %v374
          %410 = vmatprep.subr.mxu0 0.0
          %411 = vmatpush1.msra.mxu0 %v369
          %412 = vmatprep.subr.mxu0 0.0
          %413 = vmatpush1.msra.mxu0 %v364
          %414 = vmatprep.subr.mxu0 0.0
          %415 = vmatpush1.msra.mxu0 %v359
          %416 = vmatprep.subr.mxu0 0.0
          %417 = vmatpush2.msra.mxu0 0.0
          %418 = vmatprep.subr.mxu0 0.0
          %419 = vmatpush2.msra.mxu0 0.0
          %420 = vmatprep.subr.mxu0 0.0
          %421 = vmatpush2.msra.mxu0 0.0
          %422 = vmatprep.subr.mxu0 0.0
          %423 = vmatpush2.msra.mxu0 0.0
          %424 = vmatprep.subr.mxu0 0.0
          %425 = vmatpush2.msra.mxu0 0.0
          %426 = vmatprep.subr.mxu0 0.0
          %427 = vmatpush2.msra.mxu0 0.0
          %428 = vmatprep.subr.mxu0 0.0
          %429 = vmatpush2.msra.mxu0 0.0
          %430 = vmatprep.subr.mxu0 0.0
          %431 = vmatpush2.msra.mxu0 0.0
          %432 = vmatprep.subr.mxu0 0.0
          %433 = vmatpush2.msra.mxu0 0.0
          %434 = vmatprep.subr.mxu0 0.0
          %435 = vmatpush2.msra.mxu0 0.0
          %436 = vmatprep.subr.mxu0 0.0
          %437 = vmatpush2.msra.mxu0 0.0
          %438 = vmatprep.subr.mxu0 0.0
          %439 = vmatpush2.msra.mxu0 0.0
          %440 = vmatprep.subr.mxu0 0.0
          %441 = vmatpush2.msra.mxu0 0.0
          %442 = vmatprep.subr.mxu0 0.0
          %443 = vmatpush2.msra.mxu0 0.0
          %444 = vmatprep.subr.mxu0 0.0
          %445 = vmatpush2.msra.mxu0 0.0
          %446 = vmatprep.subr.mxu0 0.0
          %447 = vmatpush2.msra.mxu0 0.0
          %448 = vmatprep.mubr.f32.mxu0 0.0
          %449 = vmatmul.mubr.f32.gmra.mxu0 %v379
          %v450 = vpop.f32.mrf.mxu0
          %v451 = vadd.f32 0.0, %v450
          %v452 = vpop.f32.mrf.mxu0
          %453 = vmatprep.mubr.f32.mxu0 0.0
          %454 = vmatmul.mubr.f32.gmra.mxu0 %v382
          %v455 = vpop.f32.mrf.mxu0
          %v456 = vadd.f32 0.0, %v455
          %v457 = vpop.f32.mrf.mxu0
          %458 = vdwg.mxu0
          %459 = vst [vmem:[#allocation4] sm:$0xff] %v451
          %460 = vst [vmem:[#allocation4 + $0x8] sm:$0xf] %v456
          %v461 = vmul.f32 %v252, %v252
          %v462 = vmul.f32 %v253, %v253
          %v463 = vmul.f32 %v254, %v254
          %v464 = vmul.f32 %v255, %v255
          %v466 = vsel %vm267, %v461, 0
          %v469 = vsel %vm267, %v462, 0
          %v472 = vsel %vm267, %v463, 0
          %v475 = vsel %vm267, %v464, 0
          %477 = vmatprep.subr.mxu0 0.0
          %478 = vmatpush1.msra.mxu0 0.0
          %479 = vmatprep.subr.mxu0 0.0
          %480 = vmatpush1.msra.mxu0 0.0
          %481 = vmatprep.subr.mxu0 0.0
          %482 = vmatpush1.msra.mxu0 0.0
          %483 = vmatprep.subr.mxu0 0.0
          %484 = vmatpush1.msra.mxu0 0.0
          %485 = vmatprep.subr.mxu0 0.0
          %486 = vmatpush1.msra.mxu0 0.0
          %487 = vmatprep.subr.mxu0 0.0
          %488 = vmatpush1.msra.mxu0 0.0
          %489 = vmatprep.subr.mxu0 0.0
          %490 = vmatpush1.msra.mxu0 0.0
          %491 = vmatprep.subr.mxu0 0.0
          %492 = vmatpush1.msra.mxu0 0.0
          %493 = vmatprep.subr.mxu0 0.0
          %494 = vmatpush1.msra.mxu0 0.0
          %495 = vmatprep.subr.mxu0 0.0
          %496 = vmatpush1.msra.mxu0 0.0
          %497 = vmatprep.subr.mxu0 0.0
          %498 = vmatpush1.msra.mxu0 0.0
          %499 = vmatprep.subr.mxu0 0.0
          %500 = vmatpush1.msra.mxu0 0.0
          %501 = vmatprep.subr.mxu0 0.0
          %502 = vmatpush1.msra.mxu0 0.0
          %503 = vmatprep.subr.mxu0 0.0
          %504 = vmatpush1.msra.mxu0 0.0
          %505 = vmatprep.subr.mxu0 0.0
          %506 = vmatpush1.msra.mxu0 %v257
          %507 = vmatprep.subr.mxu0 0.0
          %508 = vmatpush1.msra.mxu0 %v256
          %509 = vmatprep.subr.mxu0 0.0
          %510 = vmatpush2.msra.mxu0 0.0
          %511 = vmatprep.subr.mxu0 0.0
          %512 = vmatpush2.msra.mxu0 0.0
          %513 = vmatprep.subr.mxu0 0.0
          %514 = vmatpush2.msra.mxu0 0.0
          %515 = vmatprep.subr.mxu0 0.0
          %516 = vmatpush2.msra.mxu0 0.0
          %517 = vmatprep.subr.mxu0 0.0
          %518 = vmatpush2.msra.mxu0 0.0
          %519 = vmatprep.subr.mxu0 0.0
          %520 = vmatpush2.msra.mxu0 0.0
          %521 = vmatprep.subr.mxu0 0.0
          %522 = vmatpush2.msra.mxu0 0.0
          %523 = vmatprep.subr.mxu0 0.0
          %524 = vmatpush2.msra.mxu0 0.0
          %525 = vmatprep.subr.mxu0 0.0
          %526 = vmatpush2.msra.mxu0 0.0
          %527 = vmatprep.subr.mxu0 0.0
          %528 = vmatpush2.msra.mxu0 0.0
          %529 = vmatprep.subr.mxu0 0.0
          %530 = vmatpush2.msra.mxu0 0.0
          %531 = vmatprep.subr.mxu0 0.0
          %532 = vmatpush2.msra.mxu0 0.0
          %533 = vmatprep.subr.mxu0 0.0
          %534 = vmatpush2.msra.mxu0 0.0
          %535 = vmatprep.subr.mxu0 0.0
          %536 = vmatpush2.msra.mxu0 0.0
          %537 = vmatprep.subr.mxu0 0.0
          %538 = vmatpush2.msra.mxu0 0.0
          %539 = vmatprep.subr.mxu0 0.0
          %540 = vmatpush2.msra.mxu0 0.0
          %541 = vmatprep.mubr.f32.mxu0 0.0
          %542 = vmatmul.mubr.f32.gmra.mxu0 %v466
          %v543 = vpop.f32.mrf.mxu0
          %v544 = vadd.f32 0.0, %v543
          %v545 = vpop.f32.mrf.mxu0
          %546 = vmatprep.mubr.f32.mxu0 0.0
          %547 = vmatmul.mubr.f32.gmra.mxu0 %v469
          %v548 = vpop.f32.mrf.mxu0
          %v549 = vadd.f32 0.0, %v548
          %v550 = vpop.f32.mrf.mxu0
          %551 = vmatprep.mubr.f32.mxu0 0.0
          %552 = vmatmul.mubr.f32.gmra.mxu0 %v472
          %v553 = vpop.f32.mrf.mxu0
          %v554 = vadd.f32 0.0, %v553
          %v555 = vpop.f32.mrf.mxu0
          %556 = vmatprep.mubr.f32.mxu0 0.0
          %557 = vmatmul.mubr.f32.gmra.mxu0 %v475
          %v558 = vpop.f32.mrf.mxu0
          %v559 = vadd.f32 0.0, %v558
          %v560 = vpop.f32.mrf.mxu0
          %561 = vdwg.mxu0
          %562 = vmatprep.subr.mxu0 0.0
          %563 = vmatpush1.msra.mxu0 0.0
          %564 = vmatprep.subr.mxu0 0.0
          %565 = vmatpush1.msra.mxu0 0.0
          %566 = vmatprep.subr.mxu0 0.0
          %567 = vmatpush1.msra.mxu0 0.0
          %568 = vmatprep.subr.mxu0 0.0
          %569 = vmatpush1.msra.mxu0 0.0
          %570 = vmatprep.subr.mxu0 0.0
          %571 = vmatpush1.msra.mxu0 0.0
          %572 = vmatprep.subr.mxu0 0.0
          %573 = vmatpush1.msra.mxu0 0.0
          %574 = vmatprep.subr.mxu0 0.0
          %575 = vmatpush1.msra.mxu0 0.0
          %576 = vmatprep.subr.mxu0 0.0
          %577 = vmatpush1.msra.mxu0 0.0
          %578 = vmatprep.subr.mxu0 0.0
          %579 = vmatpush1.msra.mxu0 0.0
          %580 = vmatprep.subr.mxu0 0.0
          %581 = vmatpush1.msra.mxu0 0.0
          %582 = vmatprep.subr.mxu0 0.0
          %583 = vmatpush1.msra.mxu0 0.0
          %584 = vmatprep.subr.mxu0 0.0
          %585 = vmatpush1.msra.mxu0 0.0
          %586 = vmatprep.subr.mxu0 0.0
          %587 = vmatpush1.msra.mxu0 %v559
          %588 = vmatprep.subr.mxu0 0.0
          %589 = vmatpush1.msra.mxu0 %v554
          %590 = vmatprep.subr.mxu0 0.0
          %591 = vmatpush1.msra.mxu0 %v549
          %592 = vmatprep.subr.mxu0 0.0
          %593 = vmatpush1.msra.mxu0 %v544
          %594 = vmatprep.subr.mxu0 0.0
          %595 = vmatpush2.msra.mxu0 0.0
          %596 = vmatprep.subr.mxu0 0.0
          %597 = vmatpush2.msra.mxu0 0.0
          %598 = vmatprep.subr.mxu0 0.0
          %599 = vmatpush2.msra.mxu0 0.0
          %600 = vmatprep.subr.mxu0 0.0
          %601 = vmatpush2.msra.mxu0 0.0
          %602 = vmatprep.subr.mxu0 0.0
          %603 = vmatpush2.msra.mxu0 0.0
          %604 = vmatprep.subr.mxu0 0.0
          %605 = vmatpush2.msra.mxu0 0.0
          %606 = vmatprep.subr.mxu0 0.0
          %607 = vmatpush2.msra.mxu0 0.0
          %608 = vmatprep.subr.mxu0 0.0
          %609 = vmatpush2.msra.mxu0 0.0
          %610 = vmatprep.subr.mxu0 0.0
          %611 = vmatpush2.msra.mxu0 0.0
          %612 = vmatprep.subr.mxu0 0.0
          %613 = vmatpush2.msra.mxu0 0.0
          %614 = vmatprep.subr.mxu0 0.0
          %615 = vmatpush2.msra.mxu0 0.0
          %616 = vmatprep.subr.mxu0 0.0
          %617 = vmatpush2.msra.mxu0 0.0
          %618 = vmatprep.subr.mxu0 0.0
          %619 = vmatpush2.msra.mxu0 0.0
          %620 = vmatprep.subr.mxu0 0.0
          %621 = vmatpush2.msra.mxu0 0.0
          %622 = vmatprep.subr.mxu0 0.0
          %623 = vmatpush2.msra.mxu0 0.0
          %624 = vmatprep.subr.mxu0 0.0
          %625 = vmatpush2.msra.mxu0 0.0
          %626 = vmatprep.mubr.f32.mxu0 0.0
          %627 = vmatmul.mubr.f32.gmra.mxu0 %v379
          %v628 = vpop.f32.mrf.mxu0
          %v629 = vadd.f32 0.0, %v628
          %v630 = vpop.f32.mrf.mxu0
          %631 = vmatprep.mubr.f32.mxu0 0.0
          %632 = vmatmul.mubr.f32.gmra.mxu0 %v382
          %v633 = vpop.f32.mrf.mxu0
          %v634 = vadd.f32 0.0, %v633
          %v635 = vpop.f32.mrf.mxu0
          %636 = vdwg.mxu0
          %v637 = vmul.f32 %v451, %v451
          %v638 = vmul.f32 %v456, %v456
          %v639 = vsub.f32 %v629, %v637
          %v640 = vsub.f32 %v634, %v638
          %641 = vst [vmem:[#allocation5] sm:$0xff] %v639
          %642 = vst [vmem:[#allocation5 + $0x8] sm:$0xf] %v640
        $region56: #{tpu_custom_call.1} parent=35 // pred_fallthru
          _
        %p643 = scmp.gt.s32.totalorder %s21, 0
        // Predicated region
        $region57: #{tpu_custom_call.1} parent=35 // pred_check
          %p644 = pneg %p643
        $region58: #{tpu_custom_call.1} parent=35 // pred_check_branch
          %646 = sbr.rel (%p644) target = $region60
        $region59: #{tpu_custom_call.1} parent=35 // pred_region
          %v647 = vld [vmem:[#allocation2] sm:$0xff]
          %v648 = vld [vmem:[#allocation2 + $0x8] sm:$0xff]
          %v649 = vld [vmem:[#allocation2 + $0x10] sm:$0xff]
          %v650 = vld [vmem:[#allocation2 + $0x18] sm:$0xff]
          %v651 = vmax.f32 %v647, %v248
          %v652 = vmax.f32 %v648, %v249
          %v653 = vmax.f32 %v649, %v250
          %v654 = vmax.f32 %v650, %v251
          %vm655 = vcmask 130048
          %656 = vst.msk [vmem:[#allocation2] sm:$0xff] %vm655, %v651
          %657 = vst.msk [vmem:[#allocation2 + $0x8] sm:$0xff] %vm655, %v652
          %658 = vst.msk [vmem:[#allocation2 + $0x10] sm:$0xff] %vm655, %v653
          %659 = vst.msk [vmem:[#allocation2 + $0x18] sm:$0xff] %vm655, %v654
        $region60: #{tpu_custom_call.1} parent=35 // pred_fallthru
          _
        %664 = vrot.lane.b32.xlu0 %v248, 1
        %v665 = vpop.permute.xlu0 %664
        %666 = vrot.lane.b32.xlu0 %v249, 1
        %v667 = vpop.permute.xlu0 %666
        %668 = vrot.lane.b32.xlu0 %v250, 1
        %v669 = vpop.permute.xlu0 %668
        %670 = vrot.lane.b32.xlu0 %v251, 1
        %v671 = vpop.permute.xlu0 %670
        %vm676 = vcmask 138248
        %677 = vst.msk [vmem:[#allocation3 + $0x1] sm:$0xff] %vm676, %v665
        %678 = vst.msk [vmem:[#allocation3 + $0x9] sm:$0xff] %vm676, %v667
        %679 = vst.msk [vmem:[#allocation3 + $0x19] sm:$0xff] %vm676, %v669
        %680 = vst.msk [vmem:[#allocation3 + $0x21] sm:$0xff] %vm676, %v671
        %v681 = vld [vmem:[#allocation3] sm:$0xff]
        %v682 = vld [vmem:[#allocation3 + $0x8] sm:$0xff]
        %v683 = vld [vmem:[#allocation3 + $0x10] sm:$0x3]
        %v684 = vld [vmem:[#allocation3 + $0x18] sm:$0xff]
        %v685 = vld [vmem:[#allocation3 + $0x20] sm:$0xff]
        %v686 = vld [vmem:[#allocation3 + $0x28] sm:$0x3]
        %693 = vrot.lane.b32.xlu0 %v681, 2
        %v694 = vpop.permute.xlu0 %693
        %695 = vrot.lane.b32.xlu0 %v682, 2
        %v696 = vpop.permute.xlu0 %695
        %697 = vrot.lane.b32.xlu0 %v683, 2
        %v698 = vpop.permute.xlu0 %697
        %699 = vrot.lane.b32.xlu0 %v684, 2
        %v700 = vpop.permute.xlu0 %699
        %701 = vrot.lane.b32.xlu0 %v685, 2
        %v702 = vpop.permute.xlu0 %701
        %703 = vrot.lane.b32.xlu0 %v686, 2
        %v704 = vpop.permute.xlu0 %703
        %v711 = vsub.f32 %v681, %v694
        %v712 = vsub.f32 %v682, %v696
        %v713 = vsub.f32 %v683, %v698
        %v714 = vsub.f32 %v684, %v700
        %v715 = vsub.f32 %v685, %v702
        %v716 = vsub.f32 %v686, %v704
        %v717 = vadd.f32 %v711, %v711
        %v718 = vadd.f32 %v712, %v712
        %v719 = vadd.f32 %v713, %v713
        %v720 = vadd.f32 %v714, %v714
        %v721 = vadd.f32 %v715, %v715
        %v722 = vadd.f32 %v716, %v716
        %vm729 = vcmask 1046528
        %v730 = vrot.slane %v717, 1
        %v731 = vrot.slane %v718, 1
        %v732 = vsel %vm729, %v730, %v731
        %v733 = vrot.slane %v719, 1
        %v734 = vsel %vm729, %v731, %v733
        %v735 = vrot.slane %v720, 1
        %v736 = vrot.slane %v721, 1
        %v737 = vsel %vm729, %v735, %v736
        %v738 = vrot.slane %v722, 1
        %v739 = vsel %vm729, %v736, %v738
        %v744 = vadd.f32 %v711, %v732
        %v745 = vadd.f32 %v712, %v734
        %v746 = vadd.f32 %v714, %v737
        %v747 = vadd.f32 %v715, %v739
        %vm754 = vcmask 1045504
        %v755 = vrot.slane %v711, 2
        %v756 = vrot.slane %v712, 2
        %v757 = vsel %vm754, %v755, %v756
        %v758 = vrot.slane %v713, 2
        %v759 = vsel %vm754, %v756, %v758
        %v760 = vrot.slane %v714, 2
        %v761 = vrot.slane %v715, 2
        %v762 = vsel %vm754, %v760, %v761
        %v763 = vrot.slane %v716, 2
        %v764 = vsel %vm754, %v761, %v763
        %v769 = vadd.f32 %v744, %v757
        %v770 = vadd.f32 %v745, %v759
        %v771 = vadd.f32 %v746, %v762
        %v772 = vadd.f32 %v747, %v764
        %v773 = vrot.slane %v681, 2
        %v774 = vrot.slane %v682, 2
        %v775 = vsel %vm754, %v773, %v774
        %v776 = vrot.slane %v683, 2
        %v777 = vsel %vm754, %v774, %v776
        %v778 = vrot.slane %v684, 2
        %v779 = vrot.slane %v685, 2
        %v780 = vsel %vm754, %v778, %v779
        %v781 = vrot.slane %v686, 2
        %v782 = vsel %vm754, %v779, %v781
        %v787 = vsub.f32 %v681, %v775
        %v788 = vsub.f32 %v682, %v777
        %v789 = vsub.f32 %v684, %v780
        %v790 = vsub.f32 %v685, %v782
        %v791 = vadd.f32 %v787, %v787
        %v792 = vadd.f32 %v788, %v788
        %v793 = vadd.f32 %v789, %v789
        %v794 = vadd.f32 %v790, %v790
        %799 = vrot.lane.b32.xlu0 %v791, 127
        %v800 = vpop.permute.xlu0 %799
        %801 = vrot.lane.b32.xlu0 %v792, 127
        %v802 = vpop.permute.xlu0 %801
        %803 = vrot.lane.b32.xlu0 %v793, 127
        %v804 = vpop.permute.xlu0 %803
        %805 = vrot.lane.b32.xlu0 %v794, 127
        %v806 = vpop.permute.xlu0 %805
        %v811 = vadd.f32 %v787, %v800
        %v812 = vadd.f32 %v788, %v802
        %v813 = vadd.f32 %v789, %v804
        %v814 = vadd.f32 %v790, %v806
        %819 = vrot.lane.b32.xlu0 %v787, 126
        %v820 = vpop.permute.xlu0 %819
        %821 = vrot.lane.b32.xlu0 %v788, 126
        %v822 = vpop.permute.xlu0 %821
        %823 = vrot.lane.b32.xlu0 %v789, 126
        %v824 = vpop.permute.xlu0 %823
        %825 = vrot.lane.b32.xlu0 %v790, 126
        %v826 = vpop.permute.xlu0 %825
        %v831 = vadd.f32 %v811, %v820
        %v832 = vadd.f32 %v812, %v822
        %v833 = vadd.f32 %v813, %v824
        %v834 = vadd.f32 %v814, %v826
        %v835 = vand.u32 2147483647, %v769
        %v836 = vand.u32 2147483647, %v770
        %v837 = vand.u32 2147483647, %v771
        %v838 = vand.u32 2147483647, %v772
        %v839 = vand.u32 2147483647, %v831
        %v840 = vand.u32 2147483647, %v832
        %v841 = vand.u32 2147483647, %v833
        %v842 = vand.u32 2147483647, %v834
        %847 = vrot.lane.b32.xlu0 %v839, 2
        %v848 = vpop.permute.xlu0 %847
        %849 = vrot.lane.b32.xlu0 %v840, 2
        %v850 = vpop.permute.xlu0 %849
        %851 = vrot.lane.b32.xlu0 %v841, 2
        %v852 = vpop.permute.xlu0 %851
        %853 = vrot.lane.b32.xlu0 %v842, 2
        %v854 = vpop.permute.xlu0 %853
        %v859 = vadd.f32 %v835, %v848
        %v860 = vadd.f32 %v836, %v850
        %v861 = vadd.f32 %v837, %v852
        %v862 = vadd.f32 %v838, %v854
        %867 = vrot.lane.b32.xlu0 %v859, 126
        %v868 = vpop.permute.xlu0 %867
        %869 = vrot.lane.b32.xlu0 %v860, 126
        %v870 = vpop.permute.xlu0 %869
        %871 = vrot.lane.b32.xlu0 %v861, 126
        %v872 = vpop.permute.xlu0 %871
        %873 = vrot.lane.b32.xlu0 %v862, 126
        %v874 = vpop.permute.xlu0 %873
        %vm879 = vcmask 130048
        %v880 = vsel %vm879, %v868, 0.0
        %v881 = vsel %vm879, %v870, 0.0
        %v882 = vadd.f32 %v880, %v881
        %v883 = vsel %vm879, %v872, 0.0
        %v884 = vadd.f32 %v882, %v883
        %v885 = vsel %vm879, %v874, 0.0
        %v886 = vadd.f32 %v884, %v885
        %887 = vadd.xlane.f32.xlu0 %v886
        %v888 = vpop.xlane.xlu0 %887
        %v889 = vrot.slane %v888, 4
        %v890 = vadd.f32 %v888, %v889
        %v891 = vrot.slane %v890, 2
        %v892 = vadd.f32 %v890, %v891
        %v893 = vrot.slane %v892, 1
        %v894 = vadd.f32 %v892, %v893
        %s895 = vtos %v894
        %v896 = vsel %vm879, %v248, 0
        %v898 = vsel %vm879, %v249, 0
        %v900 = vsel %vm879, %v250, 0
        %v902 = vsel %vm879, %v251, 0
        %904 = vmatprep.subr.mxu0 0.0
        %905 = vmatpush1.msra.mxu0 0.0
        %906 = vmatprep.subr.mxu0 0.0
        %907 = vmatpush1.msra.mxu0 0.0
        %908 = vmatprep.subr.mxu0 0.0
        %909 = vmatpush1.msra.mxu0 0.0
        %910 = vmatprep.subr.mxu0 0.0
        %911 = vmatpush1.msra.mxu0 0.0
        %912 = vmatprep.subr.mxu0 0.0
        %913 = vmatpush1.msra.mxu0 0.0
        %914 = vmatprep.subr.mxu0 0.0
        %915 = vmatpush1.msra.mxu0 0.0
        %916 = vmatprep.subr.mxu0 0.0
        %917 = vmatpush1.msra.mxu0 0.0
        %918 = vmatprep.subr.mxu0 0.0
        %919 = vmatpush1.msra.mxu0 0.0
        %920 = vmatprep.subr.mxu0 0.0
        %921 = vmatpush1.msra.mxu0 0.0
        %922 = vmatprep.subr.mxu0 0.0
        %923 = vmatpush1.msra.mxu0 0.0
        %924 = vmatprep.subr.mxu0 0.0
        %925 = vmatpush1.msra.mxu0 0.0
        %926 = vmatprep.subr.mxu0 0.0
        %927 = vmatpush1.msra.mxu0 0.0
        %928 = vmatprep.subr.mxu0 0.0
        %929 = vmatpush1.msra.mxu0 0.0
        %930 = vmatprep.subr.mxu0 0.0
        %931 = vmatpush1.msra.mxu0 0.0
        %932 = vmatprep.subr.mxu0 0.0
        %933 = vmatpush1.msra.mxu0 %v257
        %934 = vmatprep.subr.mxu0 0.0
        %935 = vmatpush1.msra.mxu0 %v256
        %936 = vmatprep.subr.mxu0 0.0
        %937 = vmatpush2.msra.mxu0 0.0
        %938 = vmatprep.subr.mxu0 0.0
        %939 = vmatpush2.msra.mxu0 0.0
        %940 = vmatprep.subr.mxu0 0.0
        %941 = vmatpush2.msra.mxu0 0.0
        %942 = vmatprep.subr.mxu0 0.0
        %943 = vmatpush2.msra.mxu0 0.0
        %944 = vmatprep.subr.mxu0 0.0
        %945 = vmatpush2.msra.mxu0 0.0
        %946 = vmatprep.subr.mxu0 0.0
        %947 = vmatpush2.msra.mxu0 0.0
        %948 = vmatprep.subr.mxu0 0.0
        %949 = vmatpush2.msra.mxu0 0.0
        %950 = vmatprep.subr.mxu0 0.0
        %951 = vmatpush2.msra.mxu0 0.0
        %952 = vmatprep.subr.mxu0 0.0
        %953 = vmatpush2.msra.mxu0 0.0
        %954 = vmatprep.subr.mxu0 0.0
        %955 = vmatpush2.msra.mxu0 0.0
        %956 = vmatprep.subr.mxu0 0.0
        %957 = vmatpush2.msra.mxu0 0.0
        %958 = vmatprep.subr.mxu0 0.0
        %959 = vmatpush2.msra.mxu0 0.0
        %960 = vmatprep.subr.mxu0 0.0
        %961 = vmatpush2.msra.mxu0 0.0
        %962 = vmatprep.subr.mxu0 0.0
        %963 = vmatpush2.msra.mxu0 0.0
        %964 = vmatprep.subr.mxu0 0.0
        %965 = vmatpush2.msra.mxu0 0.0
        %966 = vmatprep.subr.mxu0 0.0
        %967 = vmatpush2.msra.mxu0 0.0
        %968 = vmatprep.mubr.f32.mxu0 0.0
        %969 = vmatmul.mubr.f32.gmra.mxu0 %v896
        %v970 = vpop.f32.mrf.mxu0
        %v971 = vadd.f32 0.0, %v970
        %v972 = vpop.f32.mrf.mxu0
        %973 = vmatprep.mubr.f32.mxu0 0.0
        %974 = vmatmul.mubr.f32.gmra.mxu0 %v898
        %v975 = vpop.f32.mrf.mxu0
        %v976 = vadd.f32 0.0, %v975
        %v977 = vpop.f32.mrf.mxu0
        %978 = vmatprep.mubr.f32.mxu0 0.0
        %979 = vmatmul.mubr.f32.gmra.mxu0 %v900
        %v980 = vpop.f32.mrf.mxu0
        %v981 = vadd.f32 0.0, %v980
        %v982 = vpop.f32.mrf.mxu0
        %983 = vmatprep.mubr.f32.mxu0 0.0
        %984 = vmatmul.mubr.f32.gmra.mxu0 %v902
        %v985 = vpop.f32.mrf.mxu0
        %v986 = vadd.f32 0.0, %v985
        %v987 = vpop.f32.mrf.mxu0
        %988 = vdwg.mxu0
        %vm989 = vcmask 261120
        %v991 = vsel %vm989, %v258, 0
        %v994 = vsel %vm989, %v259, 0
        %996 = vmatprep.subr.mxu0 0.0
        %997 = vmatpush1.msra.mxu0 0.0
        %998 = vmatprep.subr.mxu0 0.0
        %999 = vmatpush1.msra.mxu0 0.0
        %1000 = vmatprep.subr.mxu0 0.0
        %1001 = vmatpush1.msra.mxu0 0.0
        %1002 = vmatprep.subr.mxu0 0.0
        %1003 = vmatpush1.msra.mxu0 0.0
        %1004 = vmatprep.subr.mxu0 0.0
        %1005 = vmatpush1.msra.mxu0 0.0
        %1006 = vmatprep.subr.mxu0 0.0
        %1007 = vmatpush1.msra.mxu0 0.0
        %1008 = vmatprep.subr.mxu0 0.0
        %1009 = vmatpush1.msra.mxu0 0.0
        %1010 = vmatprep.subr.mxu0 0.0
        %1011 = vmatpush1.msra.mxu0 0.0
        %1012 = vmatprep.subr.mxu0 0.0
        %1013 = vmatpush1.msra.mxu0 0.0
        %1014 = vmatprep.subr.mxu0 0.0
        %1015 = vmatpush1.msra.mxu0 0.0
        %1016 = vmatprep.subr.mxu0 0.0
        %1017 = vmatpush1.msra.mxu0 0.0
        %1018 = vmatprep.subr.mxu0 0.0
        %1019 = vmatpush1.msra.mxu0 0.0
        %1020 = vmatprep.subr.mxu0 0.0
        %1021 = vmatpush1.msra.mxu0 %v986
        %1022 = vmatprep.subr.mxu0 0.0
        %1023 = vmatpush1.msra.mxu0 %v981
        %1024 = vmatprep.subr.mxu0 0.0
        %1025 = vmatpush1.msra.mxu0 %v976
        %1026 = vmatprep.subr.mxu0 0.0
        %1027 = vmatpush1.msra.mxu0 %v971
        %1028 = vmatprep.subr.mxu0 0.0
        %1029 = vmatpush2.msra.mxu0 0.0
        %1030 = vmatprep.subr.mxu0 0.0
        %1031 = vmatpush2.msra.mxu0 0.0
        %1032 = vmatprep.subr.mxu0 0.0
        %1033 = vmatpush2.msra.mxu0 0.0
        %1034 = vmatprep.subr.mxu0 0.0
        %1035 = vmatpush2.msra.mxu0 0.0
        %1036 = vmatprep.subr.mxu0 0.0
        %1037 = vmatpush2.msra.mxu0 0.0
        %1038 = vmatprep.subr.mxu0 0.0
        %1039 = vmatpush2.msra.mxu0 0.0
        %1040 = vmatprep.subr.mxu0 0.0
        %1041 = vmatpush2.msra.mxu0 0.0
        %1042 = vmatprep.subr.mxu0 0.0
        %1043 = vmatpush2.msra.mxu0 0.0
        %1044 = vmatprep.subr.mxu0 0.0
        %1045 = vmatpush2.msra.mxu0 0.0
        %1046 = vmatprep.subr.mxu0 0.0
        %1047 = vmatpush2.msra.mxu0 0.0
        %1048 = vmatprep.subr.mxu0 0.0
        %1049 = vmatpush2.msra.mxu0 0.0
        %1050 = vmatprep.subr.mxu0 0.0
        %1051 = vmatpush2.msra.mxu0 0.0
        %1052 = vmatprep.subr.mxu0 0.0
        %1053 = vmatpush2.msra.mxu0 0.0
        %1054 = vmatprep.subr.mxu0 0.0
        %1055 = vmatpush2.msra.mxu0 0.0
        %1056 = vmatprep.subr.mxu0 0.0
        %1057 = vmatpush2.msra.mxu0 0.0
        %1058 = vmatprep.subr.mxu0 0.0
        %1059 = vmatpush2.msra.mxu0 0.0
        %1060 = vmatprep.mubr.f32.mxu0 0.0
        %1061 = vmatmul.mubr.f32.gmra.mxu0 %v991
        %v1062 = vpop.f32.mrf.mxu0
        %v1063 = vadd.f32 0.0, %v1062
        %v1064 = vpop.f32.mrf.mxu0
        %1065 = vmatprep.mubr.f32.mxu0 0.0
        %1066 = vmatmul.mubr.f32.gmra.mxu0 %v994
        %v1067 = vpop.f32.mrf.mxu0
        %v1068 = vadd.f32 0.0, %v1067
        %v1069 = vpop.f32.mrf.mxu0
        %1070 = vdwg.mxu0
        %v1071 = vld [vmem:[#allocation4] sm:$0xff]
        %v1072 = vld [vmem:[#allocation4 + $0x8] sm:$0xf]
        %v1073 = vmul.f32 %v248, %v248
        %v1074 = vmul.f32 %v249, %v249
        %v1075 = vmul.f32 %v250, %v250
        %v1076 = vmul.f32 %v251, %v251
        %v1078 = vsel %vm879, %v1073, 0
        %v1081 = vsel %vm879, %v1074, 0
        %v1084 = vsel %vm879, %v1075, 0
        %v1087 = vsel %vm879, %v1076, 0
        %1089 = vmatprep.subr.mxu0 0.0
        %1090 = vmatpush1.msra.mxu0 0.0
        %1091 = vmatprep.subr.mxu0 0.0
        %1092 = vmatpush1.msra.mxu0 0.0
        %1093 = vmatprep.subr.mxu0 0.0
        %1094 = vmatpush1.msra.mxu0 0.0
        %1095 = vmatprep.subr.mxu0 0.0
        %1096 = vmatpush1.msra.mxu0 0.0
        %1097 = vmatprep.subr.mxu0 0.0
        %1098 = vmatpush1.msra.mxu0 0.0
        %1099 = vmatprep.subr.mxu0 0.0
        %1100 = vmatpush1.msra.mxu0 0.0
        %1101 = vmatprep.subr.mxu0 0.0
        %1102 = vmatpush1.msra.mxu0 0.0
        %1103 = vmatprep.subr.mxu0 0.0
        %1104 = vmatpush1.msra.mxu0 0.0
        %1105 = vmatprep.subr.mxu0 0.0
        %1106 = vmatpush1.msra.mxu0 0.0
        %1107 = vmatprep.subr.mxu0 0.0
        %1108 = vmatpush1.msra.mxu0 0.0
        %1109 = vmatprep.subr.mxu0 0.0
        %1110 = vmatpush1.msra.mxu0 0.0
        %1111 = vmatprep.subr.mxu0 0.0
        %1112 = vmatpush1.msra.mxu0 0.0
        %1113 = vmatprep.subr.mxu0 0.0
        %1114 = vmatpush1.msra.mxu0 0.0
        %1115 = vmatprep.subr.mxu0 0.0
        %1116 = vmatpush1.msra.mxu0 0.0
        %1117 = vmatprep.subr.mxu0 0.0
        %1118 = vmatpush1.msra.mxu0 %v257
        %1119 = vmatprep.subr.mxu0 0.0
        %1120 = vmatpush1.msra.mxu0 %v256
        %1121 = vmatprep.subr.mxu0 0.0
        %1122 = vmatpush2.msra.mxu0 0.0
        %1123 = vmatprep.subr.mxu0 0.0
        %1124 = vmatpush2.msra.mxu0 0.0
        %1125 = vmatprep.subr.mxu0 0.0
        %1126 = vmatpush2.msra.mxu0 0.0
        %1127 = vmatprep.subr.mxu0 0.0
        %1128 = vmatpush2.msra.mxu0 0.0
        %1129 = vmatprep.subr.mxu0 0.0
        %1130 = vmatpush2.msra.mxu0 0.0
        %1131 = vmatprep.subr.mxu0 0.0
        %1132 = vmatpush2.msra.mxu0 0.0
        %1133 = vmatprep.subr.mxu0 0.0
        %1134 = vmatpush2.msra.mxu0 0.0
        %1135 = vmatprep.subr.mxu0 0.0
        %1136 = vmatpush2.msra.mxu0 0.0
        %1137 = vmatprep.subr.mxu0 0.0
        %1138 = vmatpush2.msra.mxu0 0.0
        %1139 = vmatprep.subr.mxu0 0.0
        %1140 = vmatpush2.msra.mxu0 0.0
        %1141 = vmatprep.subr.mxu0 0.0
        %1142 = vmatpush2.msra.mxu0 0.0
        %1143 = vmatprep.subr.mxu0 0.0
        %1144 = vmatpush2.msra.mxu0 0.0
        %1145 = vmatprep.subr.mxu0 0.0
        %1146 = vmatpush2.msra.mxu0 0.0
        %1147 = vmatprep.subr.mxu0 0.0
        %1148 = vmatpush2.msra.mxu0 0.0
        %1149 = vmatprep.subr.mxu0 0.0
        %1150 = vmatpush2.msra.mxu0 0.0
        %1151 = vmatprep.subr.mxu0 0.0
        %1152 = vmatpush2.msra.mxu0 0.0
        %1153 = vmatprep.mubr.f32.mxu0 0.0
        %1154 = vmatmul.mubr.f32.gmra.mxu0 %v1078
        %v1155 = vpop.f32.mrf.mxu0
        %v1156 = vadd.f32 0.0, %v1155
        %v1157 = vpop.f32.mrf.mxu0
        %1158 = vmatprep.mubr.f32.mxu0 0.0
        %1159 = vmatmul.mubr.f32.gmra.mxu0 %v1081
        %v1160 = vpop.f32.mrf.mxu0
        %v1161 = vadd.f32 0.0, %v1160
        %v1162 = vpop.f32.mrf.mxu0
        %1163 = vmatprep.mubr.f32.mxu0 0.0
        %1164 = vmatmul.mubr.f32.gmra.mxu0 %v1084
        %v1165 = vpop.f32.mrf.mxu0
        %v1166 = vadd.f32 0.0, %v1165
        %v1167 = vpop.f32.mrf.mxu0
        %1168 = vmatprep.mubr.f32.mxu0 0.0
        %1169 = vmatmul.mubr.f32.gmra.mxu0 %v1087
        %v1170 = vpop.f32.mrf.mxu0
        %v1171 = vadd.f32 0.0, %v1170
        %v1172 = vpop.f32.mrf.mxu0
        %1173 = vdwg.mxu0
        %1174 = vmatprep.subr.mxu0 0.0
        %1175 = vmatpush1.msra.mxu0 0.0
        %1176 = vmatprep.subr.mxu0 0.0
        %1177 = vmatpush1.msra.mxu0 0.0
        %1178 = vmatprep.subr.mxu0 0.0
        %1179 = vmatpush1.msra.mxu0 0.0
        %1180 = vmatprep.subr.mxu0 0.0
        %1181 = vmatpush1.msra.mxu0 0.0
        %1182 = vmatprep.subr.mxu0 0.0
        %1183 = vmatpush1.msra.mxu0 0.0
        %1184 = vmatprep.subr.mxu0 0.0
        %1185 = vmatpush1.msra.mxu0 0.0
        %1186 = vmatprep.subr.mxu0 0.0
        %1187 = vmatpush1.msra.mxu0 0.0
        %1188 = vmatprep.subr.mxu0 0.0
        %1189 = vmatpush1.msra.mxu0 0.0
        %1190 = vmatprep.subr.mxu0 0.0
        %1191 = vmatpush1.msra.mxu0 0.0
        %1192 = vmatprep.subr.mxu0 0.0
        %1193 = vmatpush1.msra.mxu0 0.0
        %1194 = vmatprep.subr.mxu0 0.0
        %1195 = vmatpush1.msra.mxu0 0.0
        %1196 = vmatprep.subr.mxu0 0.0
        %1197 = vmatpush1.msra.mxu0 0.0
        %1198 = vmatprep.subr.mxu0 0.0
        %1199 = vmatpush1.msra.mxu0 %v1171
        %1200 = vmatprep.subr.mxu0 0.0
        %1201 = vmatpush1.msra.mxu0 %v1166
        %1202 = vmatprep.subr.mxu0 0.0
        %1203 = vmatpush1.msra.mxu0 %v1161
        %1204 = vmatprep.subr.mxu0 0.0
        %1205 = vmatpush1.msra.mxu0 %v1156
        %1206 = vmatprep.subr.mxu0 0.0
        %1207 = vmatpush2.msra.mxu0 0.0
        %1208 = vmatprep.subr.mxu0 0.0
        %1209 = vmatpush2.msra.mxu0 0.0
        %1210 = vmatprep.subr.mxu0 0.0
        %1211 = vmatpush2.msra.mxu0 0.0
        %1212 = vmatprep.subr.mxu0 0.0
        %1213 = vmatpush2.msra.mxu0 0.0
        %1214 = vmatprep.subr.mxu0 0.0
        %1215 = vmatpush2.msra.mxu0 0.0
        %1216 = vmatprep.subr.mxu0 0.0
        %1217 = vmatpush2.msra.mxu0 0.0
        %1218 = vmatprep.subr.mxu0 0.0
        %1219 = vmatpush2.msra.mxu0 0.0
        %1220 = vmatprep.subr.mxu0 0.0
        %1221 = vmatpush2.msra.mxu0 0.0
        %1222 = vmatprep.subr.mxu0 0.0
        %1223 = vmatpush2.msra.mxu0 0.0
        %1224 = vmatprep.subr.mxu0 0.0
        %1225 = vmatpush2.msra.mxu0 0.0
        %1226 = vmatprep.subr.mxu0 0.0
        %1227 = vmatpush2.msra.mxu0 0.0
        %1228 = vmatprep.subr.mxu0 0.0
        %1229 = vmatpush2.msra.mxu0 0.0
        %1230 = vmatprep.subr.mxu0 0.0
        %1231 = vmatpush2.msra.mxu0 0.0
        %1232 = vmatprep.subr.mxu0 0.0
        %1233 = vmatpush2.msra.mxu0 0.0
        %1234 = vmatprep.subr.mxu0 0.0
        %1235 = vmatpush2.msra.mxu0 0.0
        %1236 = vmatprep.subr.mxu0 0.0
        %1237 = vmatpush2.msra.mxu0 0.0
        %1238 = vmatprep.mubr.f32.mxu0 0.0
        %1239 = vmatmul.mubr.f32.gmra.mxu0 %v991
        %v1240 = vpop.f32.mrf.mxu0
        %v1241 = vadd.f32 0.0, %v1240
        %v1242 = vpop.f32.mrf.mxu0
        %1243 = vmatprep.mubr.f32.mxu0 0.0
        %1244 = vmatmul.mubr.f32.gmra.mxu0 %v994
        %v1245 = vpop.f32.mrf.mxu0
        %v1246 = vadd.f32 0.0, %v1245
        %v1247 = vpop.f32.mrf.mxu0
        %1248 = vdwg.mxu0
        %v1249 = vmul.f32 %v1063, %v1063
        %v1250 = vmul.f32 %v1068, %v1068
        %v1251 = vsub.f32 %v1241, %v1249
        %v1252 = vsub.f32 %v1246, %v1250
        %v1253 = vmul.f32 %v248, %v252
        %v1254 = vmul.f32 %v249, %v253
        %v1255 = vmul.f32 %v250, %v254
        %v1256 = vmul.f32 %v251, %v255
        %v1258 = vsel %vm879, %v1253, 0
        %v1261 = vsel %vm879, %v1254, 0
        %v1264 = vsel %vm879, %v1255, 0
        %v1267 = vsel %vm879, %v1256, 0
        %1269 = vmatprep.subr.mxu0 0.0
        %1270 = vmatpush1.msra.mxu0 0.0
        %1271 = vmatprep.subr.mxu0 0.0
        %1272 = vmatpush1.msra.mxu0 0.0
        %1273 = vmatprep.subr.mxu0 0.0
        %1274 = vmatpush1.msra.mxu0 0.0
        %1275 = vmatprep.subr.mxu0 0.0
        %1276 = vmatpush1.msra.mxu0 0.0
        %1277 = vmatprep.subr.mxu0 0.0
        %1278 = vmatpush1.msra.mxu0 0.0
        %1279 = vmatprep.subr.mxu0 0.0
        %1280 = vmatpush1.msra.mxu0 0.0
        %1281 = vmatprep.subr.mxu0 0.0
        %1282 = vmatpush1.msra.mxu0 0.0
        %1283 = vmatprep.subr.mxu0 0.0
        %1284 = vmatpush1.msra.mxu0 0.0
        %1285 = vmatprep.subr.mxu0 0.0
        %1286 = vmatpush1.msra.mxu0 0.0
        %1287 = vmatprep.subr.mxu0 0.0
        %1288 = vmatpush1.msra.mxu0 0.0
        %1289 = vmatprep.subr.mxu0 0.0
        %1290 = vmatpush1.msra.mxu0 0.0
        %1291 = vmatprep.subr.mxu0 0.0
        %1292 = vmatpush1.msra.mxu0 0.0
        %1293 = vmatprep.subr.mxu0 0.0
        %1294 = vmatpush1.msra.mxu0 0.0
        %1295 = vmatprep.subr.mxu0 0.0
        %1296 = vmatpush1.msra.mxu0 0.0
        %1297 = vmatprep.subr.mxu0 0.0
        %1298 = vmatpush1.msra.mxu0 %v257
        %1299 = vmatprep.subr.mxu0 0.0
        %1300 = vmatpush1.msra.mxu0 %v256
        %1301 = vmatprep.subr.mxu0 0.0
        %1302 = vmatpush2.msra.mxu0 0.0
        %1303 = vmatprep.subr.mxu0 0.0
        %1304 = vmatpush2.msra.mxu0 0.0
        %1305 = vmatprep.subr.mxu0 0.0
        %1306 = vmatpush2.msra.mxu0 0.0
        %1307 = vmatprep.subr.mxu0 0.0
        %1308 = vmatpush2.msra.mxu0 0.0
        %1309 = vmatprep.subr.mxu0 0.0
        %1310 = vmatpush2.msra.mxu0 0.0
        %1311 = vmatprep.subr.mxu0 0.0
        %1312 = vmatpush2.msra.mxu0 0.0
        %1313 = vmatprep.subr.mxu0 0.0
        %1314 = vmatpush2.msra.mxu0 0.0
        %1315 = vmatprep.subr.mxu0 0.0
        %1316 = vmatpush2.msra.mxu0 0.0
        %1317 = vmatprep.subr.mxu0 0.0
        %1318 = vmatpush2.msra.mxu0 0.0
        %1319 = vmatprep.subr.mxu0 0.0
        %1320 = vmatpush2.msra.mxu0 0.0
        %1321 = vmatprep.subr.mxu0 0.0
        %1322 = vmatpush2.msra.mxu0 0.0
        %1323 = vmatprep.subr.mxu0 0.0
        %1324 = vmatpush2.msra.mxu0 0.0
        %1325 = vmatprep.subr.mxu0 0.0
        %1326 = vmatpush2.msra.mxu0 0.0
        %1327 = vmatprep.subr.mxu0 0.0
        %1328 = vmatpush2.msra.mxu0 0.0
        %1329 = vmatprep.subr.mxu0 0.0
        %1330 = vmatpush2.msra.mxu0 0.0
        %1331 = vmatprep.subr.mxu0 0.0
        %1332 = vmatpush2.msra.mxu0 0.0
        %1333 = vmatprep.mubr.f32.mxu0 0.0
        %1334 = vmatmul.mubr.f32.gmra.mxu0 %v1258
        %v1335 = vpop.f32.mrf.mxu0
        %v1336 = vadd.f32 0.0, %v1335
        %v1337 = vpop.f32.mrf.mxu0
        %1338 = vmatprep.mubr.f32.mxu0 0.0
        %1339 = vmatmul.mubr.f32.gmra.mxu0 %v1261
        %v1340 = vpop.f32.mrf.mxu0
        %v1341 = vadd.f32 0.0, %v1340
        %v1342 = vpop.f32.mrf.mxu0
        %1343 = vmatprep.mubr.f32.mxu0 0.0
        %1344 = vmatmul.mubr.f32.gmra.mxu0 %v1264
        %v1345 = vpop.f32.mrf.mxu0
        %v1346 = vadd.f32 0.0, %v1345
        %v1347 = vpop.f32.mrf.mxu0
        %1348 = vmatprep.mubr.f32.mxu0 0.0
        %1349 = vmatmul.mubr.f32.gmra.mxu0 %v1267
        %v1350 = vpop.f32.mrf.mxu0
        %v1351 = vadd.f32 0.0, %v1350
        %v1352 = vpop.f32.mrf.mxu0
        %1353 = vdwg.mxu0
        %1354 = vmatprep.subr.mxu0 0.0
        %1355 = vmatpush1.msra.mxu0 0.0
        %1356 = vmatprep.subr.mxu0 0.0
        %1357 = vmatpush1.msra.mxu0 0.0
        %1358 = vmatprep.subr.mxu0 0.0
        %1359 = vmatpush1.msra.mxu0 0.0
        %1360 = vmatprep.subr.mxu0 0.0
        %1361 = vmatpush1.msra.mxu0 0.0
        %1362 = vmatprep.subr.mxu0 0.0
        %1363 = vmatpush1.msra.mxu0 0.0
        %1364 = vmatprep.subr.mxu0 0.0
        %1365 = vmatpush1.msra.mxu0 0.0
        %1366 = vmatprep.subr.mxu0 0.0
        %1367 = vmatpush1.msra.mxu0 0.0
        %1368 = vmatprep.subr.mxu0 0.0
        %1369 = vmatpush1.msra.mxu0 0.0
        %1370 = vmatprep.subr.mxu0 0.0
        %1371 = vmatpush1.msra.mxu0 0.0
        %1372 = vmatprep.subr.mxu0 0.0
        %1373 = vmatpush1.msra.mxu0 0.0
        %1374 = vmatprep.subr.mxu0 0.0
        %1375 = vmatpush1.msra.mxu0 0.0
        %1376 = vmatprep.subr.mxu0 0.0
        %1377 = vmatpush1.msra.mxu0 0.0
        %1378 = vmatprep.subr.mxu0 0.0
        %1379 = vmatpush1.msra.mxu0 %v1351
        %1380 = vmatprep.subr.mxu0 0.0
        %1381 = vmatpush1.msra.mxu0 %v1346
        %1382 = vmatprep.subr.mxu0 0.0
        %1383 = vmatpush1.msra.mxu0 %v1341
        %1384 = vmatprep.subr.mxu0 0.0
        %1385 = vmatpush1.msra.mxu0 %v1336
        %1386 = vmatprep.subr.mxu0 0.0
        %1387 = vmatpush2.msra.mxu0 0.0
        %1388 = vmatprep.subr.mxu0 0.0
        %1389 = vmatpush2.msra.mxu0 0.0
        %1390 = vmatprep.subr.mxu0 0.0
        %1391 = vmatpush2.msra.mxu0 0.0
        %1392 = vmatprep.subr.mxu0 0.0
        %1393 = vmatpush2.msra.mxu0 0.0
        %1394 = vmatprep.subr.mxu0 0.0
        %1395 = vmatpush2.msra.mxu0 0.0
        %1396 = vmatprep.subr.mxu0 0.0
        %1397 = vmatpush2.msra.mxu0 0.0
        %1398 = vmatprep.subr.mxu0 0.0
        %1399 = vmatpush2.msra.mxu0 0.0
        %1400 = vmatprep.subr.mxu0 0.0
        %1401 = vmatpush2.msra.mxu0 0.0
        %1402 = vmatprep.subr.mxu0 0.0
        %1403 = vmatpush2.msra.mxu0 0.0
        %1404 = vmatprep.subr.mxu0 0.0
        %1405 = vmatpush2.msra.mxu0 0.0
        %1406 = vmatprep.subr.mxu0 0.0
        %1407 = vmatpush2.msra.mxu0 0.0
        %1408 = vmatprep.subr.mxu0 0.0
        %1409 = vmatpush2.msra.mxu0 0.0
        %1410 = vmatprep.subr.mxu0 0.0
        %1411 = vmatpush2.msra.mxu0 0.0
        %1412 = vmatprep.subr.mxu0 0.0
        %1413 = vmatpush2.msra.mxu0 0.0
        %1414 = vmatprep.subr.mxu0 0.0
        %1415 = vmatpush2.msra.mxu0 0.0
        %1416 = vmatprep.subr.mxu0 0.0
        %1417 = vmatpush2.msra.mxu0 0.0
        %1418 = vmatprep.mubr.f32.mxu0 0.0
        %1419 = vmatmul.mubr.f32.gmra.mxu0 %v991
        %v1420 = vpop.f32.mrf.mxu0
        %v1421 = vadd.f32 0.0, %v1420
        %v1422 = vpop.f32.mrf.mxu0
        %1423 = vmatprep.mubr.f32.mxu0 0.0
        %1424 = vmatmul.mubr.f32.gmra.mxu0 %v994
        %v1425 = vpop.f32.mrf.mxu0
        %v1426 = vadd.f32 0.0, %v1425
        %v1427 = vpop.f32.mrf.mxu0
        %1428 = vdwg.mxu0
        %v1429 = vmul.f32 %v1063, %v1071
        %v1430 = vmul.f32 %v1068, %v1072
        %v1431 = vsub.f32 %v1421, %v1429
        %v1432 = vsub.f32 %v1426, %v1430
        %v1433 = vld [vmem:[#allocation5] sm:$0xff]
        %v1434 = vld [vmem:[#allocation5 + $0x8] sm:$0xf]
        %v1435 = vmul.f32 %v1063, 2.0
        %v1436 = vmul.f32 %v1068, 2.0
        %v1437 = vmul.f32 %v1435, %v1071
        %v1438 = vmul.f32 %v1436, %v1072
        %v1439 = vadd.f32 %v1437, 0.0001
        %v1440 = vadd.f32 %v1438, 0.0001
        %v1441 = vmul.f32 %v1431, 2.0
        %v1442 = vmul.f32 %v1432, 2.0
        %v1443 = vadd.f32 %v1441, 0.0009
        %v1444 = vadd.f32 %v1442, 0.0009
        %v1445 = vmul.f32 %v1439, %v1443
        %v1446 = vmul.f32 %v1440, %v1444
        %v1447 = vmul.f32 %v1071, %v1071
        %v1448 = vmul.f32 %v1072, %v1072
        %v1449 = vadd.f32 %v1249, %v1447
        %v1450 = vadd.f32 %v1250, %v1448
        %v1451 = vadd.f32 %v1449, 0.0001
        %v1452 = vadd.f32 %v1450, 0.0001
        %v1453 = vadd.f32 %v1251, %v1433
        %v1454 = vadd.f32 %v1252, %v1434
        %v1455 = vadd.f32 %v1453, 0.0009
        %v1456 = vadd.f32 %v1454, 0.0009
        %v1457 = vmul.f32 %v1451, %v1455
        %v1458 = vmul.f32 %v1452, %v1456
        %v1459 = vrcp.pop %v1457
        %v1460 = vmul.f32 %v1445, %v1459
        %v1461 = vrcp.pop %v1458
        %v1462 = vmul.f32 %v1446, %v1461
        %vm1463 = vcmask 1043456
        %v1464 = vsel %vm1463, %v1462, 0.0
        %v1465 = vadd.f32 %v1460, %v1464
        %1466 = vadd.xlane.f32.xlu0 %v1465
        %v1467 = vpop.xlane.xlu0 %1466
        %v1468 = vrot.slane %v1467, 4
        %v1469 = vadd.f32 %v1467, %v1468
        %v1470 = vrot.slane %v1469, 2
        %v1471 = vadd.f32 %v1469, %v1470
        %v1472 = vrot.slane %v1471, 1
        %v1473 = vadd.f32 %v1471, %v1472
        %s1474 = vtos %v1473
        %v1475 = vld [vmem:[#allocation14] sm:$0x1]
        %s1476 = sadd.s32 %s21, 2
        %v1477 = vstv %s1476
        %vm1478 = vcmp.eq.s32.totalorder %v261, %v1477
        %v1479 = vsel %vm1478, 1, 0
        %v1480 = vcvt.s32.f32 %v1479
        %v1481 = vstv %s895
        %v1482 = vmul.f32 %v1480, %v1481
        %s1483 = sadd.s32 %s21, 4
        %v1484 = vstv %s1483
        %vm1485 = vcmp.eq.s32.totalorder %v261, %v1484
        %v1486 = vsel %vm1485, 1, 0
        %v1487 = vcvt.s32.f32 %v1486
        %v1488 = vstv %s1474
        %v1489 = vmul.f32 %v1487, %v1488
        %v1490 = vadd.f32 %v1482, %v1489
        %v1491 = vadd.f32 %v1475, %v1490
        %1492 = vst [vmem:[#allocation14] sm:$0x1] %v1491
        %p1493 = scmp.eq.s32.totalorder %s21, 1
        // Predicated region
        $region61: #{tpu_custom_call.1} parent=35 // pred_check
          %p1494 = pneg %p1493
        $region62: #{tpu_custom_call.1} parent=35 // pred_check_branch
          %1496 = sbr.rel (%p1494) target = $region64
        $region63: #{tpu_custom_call.1} parent=35 // pred_region
          %v1497 = vld [vmem:[#allocation2] sm:$0xff]
          %v1498 = vld [vmem:[#allocation2 + $0x8] sm:$0xff]
          %v1499 = vld [vmem:[#allocation2 + $0x10] sm:$0xff]
          %v1500 = vld [vmem:[#allocation2 + $0x18] sm:$0xff]
          %v1501 = vsub.f32 %v252, %v1497
          %v1502 = vsub.f32 %v253, %v1498
          %v1503 = vsub.f32 %v254, %v1499
          %v1504 = vsub.f32 %v255, %v1500
          %v1505 = vand.u32 2147483647, %v1501
          %v1506 = vand.u32 2147483647, %v1502
          %v1507 = vand.u32 2147483647, %v1503
          %v1508 = vand.u32 2147483647, %v1504
          %v1509 = vsel %vm879, %v1505, 0.0
          %v1510 = vsel %vm879, %v1506, 0.0
          %v1511 = vadd.f32 %v1509, %v1510
          %v1512 = vsel %vm879, %v1507, 0.0
          %v1513 = vadd.f32 %v1511, %v1512
          %v1514 = vsel %vm879, %v1508, 0.0
          %v1515 = vadd.f32 %v1513, %v1514
          %1516 = vadd.xlane.f32.xlu0 %v1515
          %v1517 = vpop.xlane.xlu0 %1516
          %v1518 = vrot.slane %v1517, 4
          %v1519 = vadd.f32 %v1517, %v1518
          %v1520 = vrot.slane %v1519, 2
          %v1521 = vadd.f32 %v1519, %v1520
          %v1522 = vrot.slane %v1521, 1
          %v1523 = vadd.f32 %v1521, %v1522
          %s1524 = vtos %v1523
          %1529 = vrot.lane.b32.xlu0 %v252, 1
          %v1530 = vpop.permute.xlu0 %1529
          %1531 = vrot.lane.b32.xlu0 %v253, 1
          %v1532 = vpop.permute.xlu0 %1531
          %1533 = vrot.lane.b32.xlu0 %v254, 1
          %v1534 = vpop.permute.xlu0 %1533
          %1535 = vrot.lane.b32.xlu0 %v255, 1
          %v1536 = vpop.permute.xlu0 %1535
          %1541 = vst.msk [vmem:[#allocation3 + $0x1] sm:$0xff] %vm676, %v1530
          %1542 = vst.msk [vmem:[#allocation3 + $0x9] sm:$0xff] %vm676, %v1532
          %1543 = vst.msk [vmem:[#allocation3 + $0x19] sm:$0xff] %vm676, %v1534
          %1544 = vst.msk [vmem:[#allocation3 + $0x21] sm:$0xff] %vm676, %v1536
          %v1545 = vld [vmem:[#allocation3] sm:$0xff]
          %v1546 = vld [vmem:[#allocation3 + $0x8] sm:$0xff]
          %v1547 = vld [vmem:[#allocation3 + $0x10] sm:$0x3]
          %v1548 = vld [vmem:[#allocation3 + $0x18] sm:$0xff]
          %v1549 = vld [vmem:[#allocation3 + $0x20] sm:$0xff]
          %v1550 = vld [vmem:[#allocation3 + $0x28] sm:$0x3]
          %1557 = vrot.lane.b32.xlu0 %v1545, 2
          %v1558 = vpop.permute.xlu0 %1557
          %1559 = vrot.lane.b32.xlu0 %v1546, 2
          %v1560 = vpop.permute.xlu0 %1559
          %1561 = vrot.lane.b32.xlu0 %v1547, 2
          %v1562 = vpop.permute.xlu0 %1561
          %1563 = vrot.lane.b32.xlu0 %v1548, 2
          %v1564 = vpop.permute.xlu0 %1563
          %1565 = vrot.lane.b32.xlu0 %v1549, 2
          %v1566 = vpop.permute.xlu0 %1565
          %1567 = vrot.lane.b32.xlu0 %v1550, 2
          %v1568 = vpop.permute.xlu0 %1567
          %v1575 = vsub.f32 %v1545, %v1558
          %v1576 = vsub.f32 %v1546, %v1560
          %v1577 = vsub.f32 %v1547, %v1562
          %v1578 = vsub.f32 %v1548, %v1564
          %v1579 = vsub.f32 %v1549, %v1566
          %v1580 = vsub.f32 %v1550, %v1568
          %v1581 = vadd.f32 %v1575, %v1575
          %v1582 = vadd.f32 %v1576, %v1576
          %v1583 = vadd.f32 %v1577, %v1577
          %v1584 = vadd.f32 %v1578, %v1578
          %v1585 = vadd.f32 %v1579, %v1579
          %v1586 = vadd.f32 %v1580, %v1580
          %v1593 = vrot.slane %v1581, 1
          %v1594 = vrot.slane %v1582, 1
          %v1595 = vsel %vm729, %v1593, %v1594
          %v1596 = vrot.slane %v1583, 1
          %v1597 = vsel %vm729, %v1594, %v1596
          %v1598 = vrot.slane %v1584, 1
          %v1599 = vrot.slane %v1585, 1
          %v1600 = vsel %vm729, %v1598, %v1599
          %v1601 = vrot.slane %v1586, 1
          %v1602 = vsel %vm729, %v1599, %v1601
          %v1607 = vadd.f32 %v1575, %v1595
          %v1608 = vadd.f32 %v1576, %v1597
          %v1609 = vadd.f32 %v1578, %v1600
          %v1610 = vadd.f32 %v1579, %v1602
          %v1617 = vrot.slane %v1575, 2
          %v1618 = vrot.slane %v1576, 2
          %v1619 = vsel %vm754, %v1617, %v1618
          %v1620 = vrot.slane %v1577, 2
          %v1621 = vsel %vm754, %v1618, %v1620
          %v1622 = vrot.slane %v1578, 2
          %v1623 = vrot.slane %v1579, 2
          %v1624 = vsel %vm754, %v1622, %v1623
          %v1625 = vrot.slane %v1580, 2
          %v1626 = vsel %vm754, %v1623, %v1625
          %v1631 = vadd.f32 %v1607, %v1619
          %v1632 = vadd.f32 %v1608, %v1621
          %v1633 = vadd.f32 %v1609, %v1624
          %v1634 = vadd.f32 %v1610, %v1626
          %v1635 = vrot.slane %v1545, 2
          %v1636 = vrot.slane %v1546, 2
          %v1637 = vsel %vm754, %v1635, %v1636
          %v1638 = vrot.slane %v1547, 2
          %v1639 = vsel %vm754, %v1636, %v1638
          %v1640 = vrot.slane %v1548, 2
          %v1641 = vrot.slane %v1549, 2
          %v1642 = vsel %vm754, %v1640, %v1641
          %v1643 = vrot.slane %v1550, 2
          %v1644 = vsel %vm754, %v1641, %v1643
          %v1649 = vsub.f32 %v1545, %v1637
          %v1650 = vsub.f32 %v1546, %v1639
          %v1651 = vsub.f32 %v1548, %v1642
          %v1652 = vsub.f32 %v1549, %v1644
          %v1653 = vadd.f32 %v1649, %v1649
          %v1654 = vadd.f32 %v1650, %v1650
          %v1655 = vadd.f32 %v1651, %v1651
          %v1656 = vadd.f32 %v1652, %v1652
          %1661 = vrot.lane.b32.xlu0 %v1653, 127
          %v1662 = vpop.permute.xlu0 %1661
          %1663 = vrot.lane.b32.xlu0 %v1654, 127
          %v1664 = vpop.permute.xlu0 %1663
          %1665 = vrot.lane.b32.xlu0 %v1655, 127
          %v1666 = vpop.permute.xlu0 %1665
          %1667 = vrot.lane.b32.xlu0 %v1656, 127
          %v1668 = vpop.permute.xlu0 %1667
          %v1673 = vadd.f32 %v1649, %v1662
          %v1674 = vadd.f32 %v1650, %v1664
          %v1675 = vadd.f32 %v1651, %v1666
          %v1676 = vadd.f32 %v1652, %v1668
          %1681 = vrot.lane.b32.xlu0 %v1649, 126
          %v1682 = vpop.permute.xlu0 %1681
          %1683 = vrot.lane.b32.xlu0 %v1650, 126
          %v1684 = vpop.permute.xlu0 %1683
          %1685 = vrot.lane.b32.xlu0 %v1651, 126
          %v1686 = vpop.permute.xlu0 %1685
          %1687 = vrot.lane.b32.xlu0 %v1652, 126
          %v1688 = vpop.permute.xlu0 %1687
          %v1693 = vadd.f32 %v1673, %v1682
          %v1694 = vadd.f32 %v1674, %v1684
          %v1695 = vadd.f32 %v1675, %v1686
          %v1696 = vadd.f32 %v1676, %v1688
          %v1697 = vand.u32 2147483647, %v1631
          %v1698 = vand.u32 2147483647, %v1632
          %v1699 = vand.u32 2147483647, %v1633
          %v1700 = vand.u32 2147483647, %v1634
          %v1701 = vand.u32 2147483647, %v1693
          %v1702 = vand.u32 2147483647, %v1694
          %v1703 = vand.u32 2147483647, %v1695
          %v1704 = vand.u32 2147483647, %v1696
          %1709 = vrot.lane.b32.xlu0 %v1701, 2
          %v1710 = vpop.permute.xlu0 %1709
          %1711 = vrot.lane.b32.xlu0 %v1702, 2
          %v1712 = vpop.permute.xlu0 %1711
          %1713 = vrot.lane.b32.xlu0 %v1703, 2
          %v1714 = vpop.permute.xlu0 %1713
          %1715 = vrot.lane.b32.xlu0 %v1704, 2
          %v1716 = vpop.permute.xlu0 %1715
          %v1721 = vadd.f32 %v1697, %v1710
          %v1722 = vadd.f32 %v1698, %v1712
          %v1723 = vadd.f32 %v1699, %v1714
          %v1724 = vadd.f32 %v1700, %v1716
          %1729 = vrot.lane.b32.xlu0 %v1497, 2
          %v1730 = vpop.permute.xlu0 %1729
          %1731 = vrot.lane.b32.xlu0 %v1498, 2
          %v1732 = vpop.permute.xlu0 %1731
          %1733 = vrot.lane.b32.xlu0 %v1499, 2
          %v1734 = vpop.permute.xlu0 %1733
          %1735 = vrot.lane.b32.xlu0 %v1500, 2
          %v1736 = vpop.permute.xlu0 %1735
          %v1741 = vsub.f32 %v1721, %v1730
          %v1742 = vsub.f32 %v1722, %v1732
          %v1743 = vsub.f32 %v1723, %v1734
          %v1744 = vsub.f32 %v1724, %v1736
          %v1745 = vand.u32 2147483647, %v1741
          %v1746 = vand.u32 2147483647, %v1742
          %v1747 = vand.u32 2147483647, %v1743
          %v1748 = vand.u32 2147483647, %v1744
          %1753 = vrot.lane.b32.xlu0 %v1745, 126
          %v1754 = vpop.permute.xlu0 %1753
          %1755 = vrot.lane.b32.xlu0 %v1746, 126
          %v1756 = vpop.permute.xlu0 %1755
          %1757 = vrot.lane.b32.xlu0 %v1747, 126
          %v1758 = vpop.permute.xlu0 %1757
          %1759 = vrot.lane.b32.xlu0 %v1748, 126
          %v1760 = vpop.permute.xlu0 %1759
          %v1765 = vsel %vm879, %v1754, 0.0
          %v1766 = vsel %vm879, %v1756, 0.0
          %v1767 = vadd.f32 %v1765, %v1766
          %v1768 = vsel %vm879, %v1758, 0.0
          %v1769 = vadd.f32 %v1767, %v1768
          %v1770 = vsel %vm879, %v1760, 0.0
          %v1771 = vadd.f32 %v1769, %v1770
          %1772 = vadd.xlane.f32.xlu0 %v1771
          %v1773 = vpop.xlane.xlu0 %1772
          %v1774 = vrot.slane %v1773, 4
          %v1775 = vadd.f32 %v1773, %v1774
          %v1776 = vrot.slane %v1775, 2
          %v1777 = vadd.f32 %v1775, %v1776
          %v1778 = vrot.slane %v1777, 1
          %v1779 = vadd.f32 %v1777, %v1778
          %s1780 = vtos %v1779
          %v1781 = vld [vmem:[#allocation14] sm:$0x1]
          %vm1782 = vcmp.eq.s32.totalorder %v261, 0
          %v1783 = vsel %vm1782, 1, 0
          %v1784 = vcvt.s32.f32 %v1783
          %v1785 = vstv %s1524
          %v1786 = vmul.f32 %v1784, %v1785
          %vm1787 = vcmp.eq.s32.totalorder %v261, 1
          %v1788 = vsel %vm1787, 1, 0
          %v1789 = vcvt.s32.f32 %v1788
          %v1790 = vstv %s1780
          %v1791 = vmul.f32 %v1789, %v1790
          %v1792 = vadd.f32 %v1786, %v1791
          %v1793 = vadd.f32 %v1781, %v1792
          %1794 = vst [vmem:[#allocation14] sm:$0x1] %v1793
        $region64: #{tpu_custom_call.1} parent=35 // pred_fallthru
          _
        // Predicated region
        $region65: #{tpu_custom_call.1} parent=35 // pred_check
          %p1795 = pneg %p123
        $region66: #{tpu_custom_call.1} parent=35 // pred_check_branch
          %1797 = sbr.rel (%p1795) target = $region68
        $region67: #{tpu_custom_call.1} parent=35 // pred_region
          %s1799 = ssub.s32 16, 16
          %1800 = vsyncadd [#allocation8], %s1799
          %s1802 = sshll.u32 [#allocation14], 4
          %s1803 = int_to_ptr.vmem [resolvable:$true] %s1802
          %1805 = dma.vmem_to_hbm [thread:$0]  %s1803, 16, %s4, [#allocation8]
        $region68: #{tpu_custom_call.1} parent=35 // pred_fallthru
          _
        // Predicated region
        $region69: #{tpu_custom_call.1} parent=35 // pred_check
          %p1806 = pneg %p123
        $region70: #{tpu_custom_call.1} parent=35 // pred_check_branch
          %1808 = sbr.rel (%p1806) target = $region72
        $region71: #{tpu_custom_call.1} parent=35 // pred_region
          %1809 = dma.done [#allocation8], 16
        $region72: #{tpu_custom_call.1} parent=35 // pred_fallthru
          _
      $region36: #{tpu_custom_call.1} parent=5 // pred_fallthru
        _
      %p1810 = scmp.le.s32.totalorder 2, %s16
      // Predicated region
      $region73: #{tpu_custom_call.1} parent=5 // pred_check
        %p1811 = pneg %p1810
      $region74: #{tpu_custom_call.1} parent=5 // pred_check_branch
        %1813 = sbr.rel (%p1811) target = $region76
      $region75: #{tpu_custom_call.1} parent=5 // pred_region
        %s1814 = ssub.s32 %s16, 2
      $region76: #{tpu_custom_call.1} parent=5 // pred_fallthru
        _
    $region6: #{tpu_custom_call.1} parent=1 // loop_footer
      %s20 = sadd.s32 1, %s16
    $region7: #{tpu_custom_call.1} parent=1 // loop_footer_branch
      %15 = sbr.rel target = $region3
    $region8: #{tpu_custom_call.1} parent=1 // loop_exit
      _
    %1815 = vsyncpa [#allocation7], 1
    %s1816 = scalar_lea.sflag [#allocation7], 1
    %1817 = vsyncpa %s1816, 1
    %1818 = vsyncpa [#allocation10], 1
    %1819 = vsyncpa [#allocation13], 1
    %1820 = vsyncpa [#allocation8], 1
    %s1821 = scalar_lea.sflag [#allocation8], 1
    %1822 = vsyncpa %s1821, 1

</llo_original>
